<compile_context>
chip_gen: v5e
topology: v5e:2x2
jax: 0.10.0
libtpu: 0.0.40
codegen_flags: <defaults>
</compile_context>

<pallas_src>
import jax
import jax.numpy as jnp
from jax.experimental import pallas as pl
from jax.experimental.pallas import tpu as pltpu


_VMEM_LIMIT_BYTES = 32 * 1024 * 1024   # safe per-TensorCore budget on v5e/v6e/v7x


# -----------------------------------------------------------------------------
# Kernel: one batch tile of packed rows through all four layers.
# -----------------------------------------------------------------------------
def autoencoder_kernel(x_ref, w1_ref, w2_ref, w3_ref, w4_ref, b_ref, out_ref):
    """x_ref/out_ref: (tile_r, p*D) packed rows (p original rows per row).
    w*_ref: block-diagonal kron(I_p, W_layer), pre-cast to the compute dtype.
    b_ref:  (4, p*max(64, D)) float32; row l holds tile(b_l, p) as a prefix."""
    cd = w1_ref.dtype                 # weights pre-cast once; no per-step cast
    n1 = w1_ref.shape[1]              # p * 64
    n2 = w2_ref.shape[1]              # p * 32
    n3 = w3_ref.shape[1]              # p * 64
    n4 = w4_ref.shape[1]              # p * D

    x = x_ref[...].astype(cd)         # no-op on the exact-f32 path

    # encoder: Linear(D, 64) + ReLU   (f32 MXU accumulation, f32 elementwise)
    h = jnp.dot(x, w1_ref[...], preferred_element_type=jnp.float32)
    h = jnp.maximum(h + b_ref[0:1, :n1], 0.0)
    # encoder: Linear(64, 32) + ReLU
    h = jnp.dot(h.astype(cd), w2_ref[...], preferred_element_type=jnp.float32)
    h = jnp.maximum(h + b_ref[1:2, :n2], 0.0)
    # decoder: Linear(32, 64) + ReLU
    h = jnp.dot(h.astype(cd), w3_ref[...], preferred_element_type=jnp.float32)
    h = jnp.maximum(h + b_ref[2:3, :n3], 0.0)
    # decoder: Linear(64, D)          (no final activation)
    y = jnp.dot(h.astype(cd), w4_ref[...], preferred_element_type=jnp.float32)
    out_ref[...] = (y + b_ref[3:4, :n4]).astype(out_ref.dtype)


# -----------------------------------------------------------------------------
# One-time parameter packing (call once, not per forward step)
# -----------------------------------------------------------------------------
def prepare_params(params, *, compute_dtype=jnp.float32):
    """Pick packing factor p (p*D == 128 lanes when possible), expand weights
    to block-diagonal kron(I_p, W), tile+pack the biases, and cast weights to
    `compute_dtype` once (f32 default for parity; bf16 opt-in)."""
    D = params["w1"].shape[0]
    p = 128 // D if (D <= 128 and 128 % D == 0) else 1
    eye = jnp.eye(p, dtype=jnp.float32)

    def block_diag(w):
        w = w.astype(jnp.float32)
        if p > 1:
            w = jnp.kron(eye, w)
        return w.astype(compute_dtype)

    pad_to = p * max(64, D)

    def packed_bias(b):
        b = jnp.tile(b.reshape(1, -1).astype(jnp.float32), (1, p))
        return jnp.pad(b, ((0, 0), (0, pad_to - b.shape[1])))

    return dict(
        input_dim=D,
        pack=p,
        w1=block_diag(params["w1"]),
        w2=block_diag(params["w2"]),
        w3=block_diag(params["w3"]),
        w4=block_diag(params["w4"]),
        bpack=jnp.concatenate(
            [packed_bias(params["b1"]), packed_bias(params["b2"]),
             packed_bias(params["b3"]), packed_bias(params["b4"])], axis=0),
    )


# -----------------------------------------------------------------------------
# Tile sizing / BlockSpec helpers
# -----------------------------------------------------------------------------
def _pick_tile_r(num_rows, row_bytes, batch_rows, vmem_limit_bytes,
                 target_tile_bytes=512 * 1024):
    """Packed-row tile: large (amortize ~0.35us/grid-step), VMEM-capped,
    multiple of 8 sublanes, and split so the grid has >=2 steps for any
    non-trivial batch and >=4 steps for large batches (v7x megacore)."""
    tile = max(8, target_tile_bytes // row_bytes)
    cap = max(8, (vmem_limit_bytes // 8) // row_bytes)   # x/out double-buffers + slack
    tile = min(tile, cap)

    min_steps = 1
    if batch_rows > 64:
        min_steps = 2
    if batch_rows >= 4096:
        min_steps = 4
    tile = min(tile, pl.cdiv(num_rows, min_steps))

    if tile >= num_rows:
        return num_rows                      # single full-extent block
    return max(8, (tile // 8) * 8)


def _plain_spec(shape):
    return pl.BlockSpec(shape, lambda i: (0, 0))


def _single_buffer_spec(shape):
    # Grid-invariant operands (weights/biases): one VMEM buffer is enough —
    # the block index never changes, so a second pipeline buffer and its
    # duplicate prologue DMA are pure waste.  Fall back if unsupported.
    try:
        return pl.BlockSpec(shape, lambda i: (0, 0), pipeline_mode=pl.Buffered(1))
    except Exception:
        return _plain_spec(shape)


# -----------------------------------------------------------------------------
# Wrapper
# -----------------------------------------------------------------------------
def autoencoder_forward(x, prepared, *, tile_r=None):
    """x: [B, D] float32.  `prepared` comes from prepare_params()."""
    B, D = x.shape
    assert D == prepared["input_dim"], "input_dim mismatch with prepared params"
    p = prepared["pack"]
    w1, w2, w3, w4 = prepared["w1"], prepared["w2"], prepared["w3"], prepared["w4"]
    bpack = prepared["bpack"]

    # Lane-dense packing: fold p consecutive rows into one (p*D)-lane row.
    # When B % p == 0 this is a pure metadata reshape (zero HBM copies).
    # Only a ragged batch pays a small (<= p-1 row) pad.
    if B % p:
        x = jnp.pad(x, ((0, p - B % p), (0, 0)))
    b_pad = x.shape[0]
    rows = b_pad // p
    xp = x.reshape(rows, p * D)

    row_bytes = p * D * x.dtype.itemsize
    if tile_r is None:
        tile_r = _pick_tile_r(rows, row_bytes, b_pad, _VMEM_LIMIT_BYTES)
    n_steps = pl.cdiv(rows, tile_r)

    def run(const_spec):
        grid_spec = pltpu.PrefetchScalarGridSpec(
            num_scalar_prefetch=0,
            grid=(n_steps,),
            in_specs=[
                pl.BlockSpec((tile_r, p * D), lambda i: (i, 0)),   # x tile
                const_spec(w1.shape), const_spec(w2.shape),
                const_spec(w3.shape), const_spec(w4.shape),
                const_spec(bpack.shape),                            # packed biases
            ],
            out_specs=pl.BlockSpec((tile_r, p * D), lambda i: (i, 0)),
        )
        return pl.pallas_call(
            autoencoder_kernel,
            out_shape=jax.ShapeDtypeStruct((rows, p * D), x.dtype),
            grid_spec=grid_spec,
            compiler_params=pltpu.CompilerParams(
                dimension_semantics=("parallel",),
                vmem_limit_bytes=_VMEM_LIMIT_BYTES),
        )(xp, w1, w2, w3, w4, bpack)

    try:
        out_p = run(_single_buffer_spec)
    except Exception:
        out_p = run(_plain_spec)   # same kernel, default double buffering

    out = out_p.reshape(b_pad, D)  # free metadata reshape back to [B_pad, D]
    return out if b_pad == B else out[:B]


# -----------------------------------------------------------------------------
# Reference + init (PyTorch nn.Linear-equivalent math, f32)
# -----------------------------------------------------------------------------
def init_params(key, input_dim):
    ks = jax.random.split(key, 8)

    def lin(kw, kb, fan_in, fan_out):
        bound = 1.0 / jnp.sqrt(fan_in)
        w = jax.random.uniform(kw, (fan_in, fan_out), jnp.float32, -bound, bound)
        b = jax.random.uniform(kb, (1, fan_out), jnp.float32, -bound, bound)
        return w, b

    w1, b1 = lin(ks[0], ks[1], input_dim, 64)
    w2, b2 = lin(ks[2], ks[3], 64, 32)
    w3, b3 = lin(ks[4], ks[5], 32, 64)
    w4, b4 = lin(ks[6], ks[7], 64, input_dim)
    return dict(w1=w1, b1=b1, w2=w2, b2=b2, w3=w3, b3=b3, w4=w4, b4=b4)


def reference_forward(x, p):
    h = jnp.maximum(x @ p["w1"] + p["b1"], 0.0)
    h = jnp.maximum(h @ p["w2"] + p["b2"], 0.0)
    h = jnp.maximum(h @ p["w3"] + p["b3"], 0.0)
    return h @ p["w4"] + p["b4"]


# -----------------------------------------------------------------------------
# Main
# -----------------------------------------------------------------------------
if __name__ == "__main__":
    key = jax.random.PRNGKey(0)
    k_x, k_p, k_x2 = jax.random.split(key, 3)

    input_dim = 16
    batch = 16
    x = jax.random.normal(k_x, (batch, input_dim), jnp.float32)
    params = init_params(k_p, input_dim)
    ref = reference_forward(x, params)

    # Exact-dtype (f32) path — default, PyTorch-parity.
    prep_f32 = prepare_params(params, compute_dtype=jnp.float32)
    out = jax.block_until_ready(autoencoder_forward(x, prep_f32))
    assert out.shape == (batch, input_dim)
    assert jnp.allclose(out, ref, atol=2e-2, rtol=2e-2), "f32 path mismatch"

    # bf16-operand path (f32 MXU accumulation), weights pre-cast once.
    prep_bf16 = prepare_params(params, compute_dtype=jnp.bfloat16)
    out_bf = jax.block_until_ready(autoencoder_forward(x, prep_bf16))
    assert out_bf.shape == (batch, input_dim)
    assert jnp.allclose(out_bf, ref, atol=5e-2, rtol=5e-2), "bf16 path mismatch"

    # Ragged batch (exercises the small p-group tail pad; still one tile).
    x_odd = jax.random.normal(k_x2, (13, input_dim), jnp.float32)
    out_odd = jax.block_until_ready(autoencoder_forward(x_odd, prep_f32))
    assert out_odd.shape == (13, input_dim)
    assert jnp.allclose(out_odd, reference_forward(x_odd, params),
                        atol=2e-2, rtol=2e-2), "ragged-batch mismatch"

    # Mid-size batch: auto tile picker gives >=2 grid steps (megacore split),
    # evenly divided, zero pads / zero extra copies on this path.
    x_big = jax.random.normal(k_x2, (1024, input_dim), jnp.float32)
    out_big = jax.block_until_ready(autoencoder_forward(x_big, prep_f32))
    assert out_big.shape == (1024, input_dim)
    assert jnp.allclose(out_big, reference_forward(x_big, params),
                        atol=2e-2, rtol=2e-2), "multi-step mismatch"

    print("KERNEL_OK")
</pallas_src>

<mosaic_0001>
module attributes {stable_mosaic.version = 11 : i64} {
  func.func @autoencoder_kernel(%arg0: i32, %arg1: memref<2x128xf32, #tpu.memory_space<vmem>>, %arg2: memref<128x512xf32, #tpu.memory_space<vmem>>, %arg3: memref<512x256xf32, #tpu.memory_space<vmem>>, %arg4: memref<256x512xf32, #tpu.memory_space<vmem>>, %arg5: memref<512x128xf32, #tpu.memory_space<vmem>>, %arg6: memref<4x512xf32, #tpu.memory_space<vmem>>, %arg7: memref<2x128xf32, #tpu.memory_space<vmem>>) attributes {dimension_semantics = [#tpu.dimension_semantics<parallel>], iteration_bounds = array<i64: 1>, scalar_prefetch = 0 : i64, scratch_operands = 0 : i64, tpu.core_type = #tpu.core_type<tc>, window_params = [{transform_indices = @transform_0, window_bounds = array<i64: 2, 128>}, {pipeline_mode = #tpu.pipeline_mode<synchronous>, transform_indices = @transform_1, window_bounds = array<i64: 128, 512>}, {pipeline_mode = #tpu.pipeline_mode<synchronous>, transform_indices = @transform_2, window_bounds = array<i64: 512, 256>}, {pipeline_mode = #tpu.pipeline_mode<synchronous>, transform_indices = @transform_3, window_bounds = array<i64: 256, 512>}, {pipeline_mode = #tpu.pipeline_mode<synchronous>, transform_indices = @transform_4, window_bounds = array<i64: 512, 128>}, {pipeline_mode = #tpu.pipeline_mode<synchronous>, transform_indices = @transform_5, window_bounds = array<i64: 4, 512>}, {transform_indices = @transform_6, window_bounds = array<i64: 2, 128>}]} {
    %c0 = arith.constant 0 : index
    %c0_0 = arith.constant 0 : index
    %0 = vector.load %arg1[%c0, %c0_0] : memref<2x128xf32, #tpu.memory_space<vmem>>, vector<2x128xf32>
    %c0_1 = arith.constant 0 : index
    %c0_2 = arith.constant 0 : index
    %1 = vector.load %arg2[%c0_1, %c0_2] : memref<128x512xf32, #tpu.memory_space<vmem>>, vector<128x512xf32>
    %cst = arith.constant dense<0.000000e+00> : vector<2x512xf32>
    %2 = tpu.matmul %0, %1, %cst {dimension_numbers = #tpu.dot_dimension_numbers<[1], [0], [0], [1], [0, 0, 1, 1], [], []>} : vector<2x128xf32>, vector<128x512xf32>, vector<2x512xf32> -> vector<2x512xf32>
    %c0_3 = arith.constant 0 : index
    %c0_4 = arith.constant 0 : index
    %3 = vector.load %arg6[%c0_3, %c0_4] : memref<4x512xf32, #tpu.memory_space<vmem>>, vector<1x512xf32>
    %4 = vector.broadcast %3 : vector<1x512xf32> to vector<2x512xf32>
    %5 = arith.addf %2, %4 : vector<2x512xf32>
    %cst_5 = arith.constant 0.000000e+00 : f32
    %6 = vector.broadcast %cst_5 : f32 to vector<2x512xf32>
    %7 = arith.maximumf %5, %6 : vector<2x512xf32>
    %c0_6 = arith.constant 0 : index
    %c0_7 = arith.constant 0 : index
    %8 = vector.load %arg3[%c0_6, %c0_7] : memref<512x256xf32, #tpu.memory_space<vmem>>, vector<512x256xf32>
    %cst_8 = arith.constant dense<0.000000e+00> : vector<2x256xf32>
    %9 = tpu.matmul %7, %8, %cst_8 {dimension_numbers = #tpu.dot_dimension_numbers<[1], [0], [0], [1], [0, 0, 1, 1], [], []>} : vector<2x512xf32>, vector<512x256xf32>, vector<2x256xf32> -> vector<2x256xf32>
    %c1 = arith.constant 1 : index
    %c0_9 = arith.constant 0 : index
    %10 = vector.load %arg6[%c1, %c0_9] : memref<4x512xf32, #tpu.memory_space<vmem>>, vector<1x256xf32>
    %11 = vector.broadcast %10 : vector<1x256xf32> to vector<2x256xf32>
    %12 = arith.addf %9, %11 : vector<2x256xf32>
    %cst_10 = arith.constant 0.000000e+00 : f32
    %13 = vector.broadcast %cst_10 : f32 to vector<2x256xf32>
    %14 = arith.maximumf %12, %13 : vector<2x256xf32>
    %c0_11 = arith.constant 0 : index
    %c0_12 = arith.constant 0 : index
    %15 = vector.load %arg4[%c0_11, %c0_12] : memref<256x512xf32, #tpu.memory_space<vmem>>, vector<256x512xf32>
    %cst_13 = arith.constant dense<0.000000e+00> : vector<2x512xf32>
    %16 = tpu.matmul %14, %15, %cst_13 {dimension_numbers = #tpu.dot_dimension_numbers<[1], [0], [0], [1], [0, 0, 1, 1], [], []>} : vector<2x256xf32>, vector<256x512xf32>, vector<2x512xf32> -> vector<2x512xf32>
    %c2 = arith.constant 2 : index
    %c0_14 = arith.constant 0 : index
    %17 = vector.load %arg6[%c2, %c0_14] : memref<4x512xf32, #tpu.memory_space<vmem>>, vector<1x512xf32>
    %18 = vector.broadcast %17 : vector<1x512xf32> to vector<2x512xf32>
    %19 = arith.addf %16, %18 : vector<2x512xf32>
    %cst_15 = arith.constant 0.000000e+00 : f32
    %20 = vector.broadcast %cst_15 : f32 to vector<2x512xf32>
    %21 = arith.maximumf %19, %20 : vector<2x512xf32>
    %c0_16 = arith.constant 0 : index
    %c0_17 = arith.constant 0 : index
    %22 = vector.load %arg5[%c0_16, %c0_17] : memref<512x128xf32, #tpu.memory_space<vmem>>, vector<512x128xf32>
    %cst_18 = arith.constant dense<0.000000e+00> : vector<2x128xf32>
    %23 = tpu.matmul %21, %22, %cst_18 {dimension_numbers = #tpu.dot_dimension_numbers<[1], [0], [0], [1], [0, 0, 1, 1], [], []>} : vector<2x512xf32>, vector<512x128xf32>, vector<2x128xf32> -> vector<2x128xf32>
    %c3 = arith.constant 3 : index
    %c0_19 = arith.constant 0 : index
    %24 = vector.load %arg6[%c3, %c0_19] : memref<4x512xf32, #tpu.memory_space<vmem>>, vector<1x128xf32>
    %25 = vector.broadcast %24 : vector<1x128xf32> to vector<2x128xf32>
    %26 = arith.addf %23, %25 : vector<2x128xf32>
    %c0_20 = arith.constant 0 : index
    %c0_21 = arith.constant 0 : index
    %27 = vector.load %arg7[%c0_20, %c0_21] : memref<2x128xf32, #tpu.memory_space<vmem>>, vector<2x128xf32>
    tpu.vector_store %arg7[%c0_20, %c0_21], %26 {strides = array<i32>} : memref<2x128xf32, #tpu.memory_space<vmem>>, vector<2x128xf32>,
    return
  }
  func.func @transform_0(%arg0: i32) -> (i32, i32) {
    %c0_i32 = arith.constant 0 : i32
    %c0_i32_0 = arith.constant 0 : i32
    return %arg0, %c0_i32 : i32, i32
  }
  func.func @transform_1(%arg0: i32) -> (i32, i32) {
    %c0_i32 = arith.constant 0 : i32
    %c0_i32_0 = arith.constant 0 : i32
    %c0_i32_1 = arith.constant 0 : i32
    return %c0_i32, %c0_i32_0 : i32, i32
  }
  func.func @transform_2(%arg0: i32) -> (i32, i32) {
    %c0_i32 = arith.constant 0 : i32
    %c0_i32_0 = arith.constant 0 : i32
    %c0_i32_1 = arith.constant 0 : i32
    return %c0_i32, %c0_i32_0 : i32, i32
  }
  func.func @transform_3(%arg0: i32) -> (i32, i32) {
    %c0_i32 = arith.constant 0 : i32
    %c0_i32_0 = arith.constant 0 : i32
    %c0_i32_1 = arith.constant 0 : i32
    return %c0_i32, %c0_i32_0 : i32, i32
  }
  func.func @transform_4(%arg0: i32) -> (i32, i32) {
    %c0_i32 = arith.constant 0 : i32
    %c0_i32_0 = arith.constant 0 : i32
    %c0_i32_1 = arith.constant 0 : i32
    return %c0_i32, %c0_i32_0 : i32, i32
  }
  func.func @transform_5(%arg0: i32) -> (i32, i32) {
    %c0_i32 = arith.constant 0 : i32
    %c0_i32_0 = arith.constant 0 : i32
    %c0_i32_1 = arith.constant 0 : i32
    return %c0_i32, %c0_i32_0 : i32, i32
  }
  func.func @transform_6(%arg0: i32) -> (i32, i32) {
    %c0_i32 = arith.constant 0 : i32
    %c0_i32_0 = arith.constant 0 : i32
    return %arg0, %c0_i32 : i32, i32
  }
}

module attributes {stable_mosaic.version = 11 : i64} {
  func.func @autoencoder_kernel(%arg0: i32, %arg1: memref<2x128xf32, #tpu.memory_space<vmem>>, %arg2: memref<128x512xf32, #tpu.memory_space<vmem>>, %arg3: memref<512x256xf32, #tpu.memory_space<vmem>>, %arg4: memref<256x512xf32, #tpu.memory_space<vmem>>, %arg5: memref<512x128xf32, #tpu.memory_space<vmem>>, %arg6: memref<4x512xf32, #tpu.memory_space<vmem>>, %arg7: memref<2x128xf32, #tpu.memory_space<vmem>>) attributes {dimension_semantics = [#tpu.dimension_semantics<parallel>], iteration_bounds = array<i64: 1>, scalar_prefetch = 0 : i64, scratch_operands = 0 : i64, tpu.core_type = #tpu.core_type<tc>, window_params = [{transform_indices = @transform_0, window_bounds = array<i64: 2, 128>}, {pipeline_mode = #tpu.pipeline_mode<synchronous>, transform_indices = @transform_1, window_bounds = array<i64: 128, 512>}, {pipeline_mode = #tpu.pipeline_mode<synchronous>, transform_indices = @transform_2, window_bounds = array<i64: 512, 256>}, {pipeline_mode = #tpu.pipeline_mode<synchronous>, transform_indices = @transform_3, window_bounds = array<i64: 256, 512>}, {pipeline_mode = #tpu.pipeline_mode<synchronous>, transform_indices = @transform_4, window_bounds = array<i64: 512, 128>}, {pipeline_mode = #tpu.pipeline_mode<synchronous>, transform_indices = @transform_5, window_bounds = array<i64: 4, 512>}, {transform_indices = @transform_6, window_bounds = array<i64: 2, 128>}]} {
    %c0 = arith.constant 0 : index
    %c0_0 = arith.constant 0 : index
    %0 = vector.load %arg1[%c0, %c0_0] : memref<2x128xf32, #tpu.memory_space<vmem>>, vector<2x128xf32>
    %c0_1 = arith.constant 0 : index
    %c0_2 = arith.constant 0 : index
    %1 = vector.load %arg2[%c0_1, %c0_2] : memref<128x512xf32, #tpu.memory_space<vmem>>, vector<128x512xf32>
    %cst = arith.constant dense<0.000000e+00> : vector<2x512xf32>
    %2 = tpu.matmul %0, %1, %cst {dimension_numbers = #tpu.dot_dimension_numbers<[1], [0], [0], [1], [0, 0, 1, 1], [], []>} : vector<2x128xf32>, vector<128x512xf32>, vector<2x512xf32> -> vector<2x512xf32>
    %c0_3 = arith.constant 0 : index
    %c0_4 = arith.constant 0 : index
    %3 = vector.load %arg6[%c0_3, %c0_4] : memref<4x512xf32, #tpu.memory_space<vmem>>, vector<1x512xf32>
    %4 = vector.broadcast %3 : vector<1x512xf32> to vector<2x512xf32>
    %5 = arith.addf %2, %4 : vector<2x512xf32>
    %cst_5 = arith.constant 0.000000e+00 : f32
    %6 = vector.broadcast %cst_5 : f32 to vector<2x512xf32>
    %7 = arith.maximumf %5, %6 : vector<2x512xf32>
    %c0_6 = arith.constant 0 : index
    %c0_7 = arith.constant 0 : index
    %8 = vector.load %arg3[%c0_6, %c0_7] : memref<512x256xf32, #tpu.memory_space<vmem>>, vector<512x256xf32>
    %cst_8 = arith.constant dense<0.000000e+00> : vector<2x256xf32>
    %9 = tpu.matmul %7, %8, %cst_8 {dimension_numbers = #tpu.dot_dimension_numbers<[1], [0], [0], [1], [0, 0, 1, 1], [], []>} : vector<2x512xf32>, vector<512x256xf32>, vector<2x256xf32> -> vector<2x256xf32>
    %c1 = arith.constant 1 : index
    %c0_9 = arith.constant 0 : index
    %10 = vector.load %arg6[%c1, %c0_9] : memref<4x512xf32, #tpu.memory_space<vmem>>, vector<1x256xf32>
    %11 = vector.broadcast %10 : vector<1x256xf32> to vector<2x256xf32>
    %12 = arith.addf %9, %11 : vector<2x256xf32>
    %cst_10 = arith.constant 0.000000e+00 : f32
    %13 = vector.broadcast %cst_10 : f32 to vector<2x256xf32>
    %14 = arith.maximumf %12, %13 : vector<2x256xf32>
    %c0_11 = arith.constant 0 : index
    %c0_12 = arith.constant 0 : index
    %15 = vector.load %arg4[%c0_11, %c0_12] : memref<256x512xf32, #tpu.memory_space<vmem>>, vector<256x512xf32>
    %cst_13 = arith.constant dense<0.000000e+00> : vector<2x512xf32>
    %16 = tpu.matmul %14, %15, %cst_13 {dimension_numbers = #tpu.dot_dimension_numbers<[1], [0], [0], [1], [0, 0, 1, 1], [], []>} : vector<2x256xf32>, vector<256x512xf32>, vector<2x512xf32> -> vector<2x512xf32>
    %c2 = arith.constant 2 : index
    %c0_14 = arith.constant 0 : index
    %17 = vector.load %arg6[%c2, %c0_14] : memref<4x512xf32, #tpu.memory_space<vmem>>, vector<1x512xf32>
    %18 = vector.broadcast %17 : vector<1x512xf32> to vector<2x512xf32>
    %19 = arith.addf %16, %18 : vector<2x512xf32>
    %cst_15 = arith.constant 0.000000e+00 : f32
    %20 = vector.broadcast %cst_15 : f32 to vector<2x512xf32>
    %21 = arith.maximumf %19, %20 : vector<2x512xf32>
    %c0_16 = arith.constant 0 : index
    %c0_17 = arith.constant 0 : index
    %22 = vector.load %arg5[%c0_16, %c0_17] : memref<512x128xf32, #tpu.memory_space<vmem>>, vector<512x128xf32>
    %cst_18 = arith.constant dense<0.000000e+00> : vector<2x128xf32>
    %23 = tpu.matmul %21, %22, %cst_18 {dimension_numbers = #tpu.dot_dimension_numbers<[1], [0], [0], [1], [0, 0, 1, 1], [], []>} : vector<2x512xf32>, vector<512x128xf32>, vector<2x128xf32> -> vector<2x128xf32>
    %c3 = arith.constant 3 : index
    %c0_19 = arith.constant 0 : index
    %24 = vector.load %arg6[%c3, %c0_19] : memref<4x512xf32, #tpu.memory_space<vmem>>, vector<1x128xf32>
    %25 = vector.broadcast %24 : vector<1x128xf32> to vector<2x128xf32>
    %26 = arith.addf %23, %25 : vector<2x128xf32>
    %c0_20 = arith.constant 0 : index
    %c0_21 = arith.constant 0 : index
    %27 = vector.load %arg7[%c0_20, %c0_21] : memref<2x128xf32, #tpu.memory_space<vmem>>, vector<2x128xf32>
    tpu.vector_store %arg7[%c0_20, %c0_21], %26 {strides = array<i32>} : memref<2x128xf32, #tpu.memory_space<vmem>>, vector<2x128xf32>,
    return
  }
  func.func @transform_0(%arg0: i32) -> (i32, i32) {
    %c0_i32 = arith.constant 0 : i32
    %c0_i32_0 = arith.constant 0 : i32
    return %arg0, %c0_i32 : i32, i32
  }
  func.func @transform_1(%arg0: i32) -> (i32, i32) {
    %c0_i32 = arith.constant 0 : i32
    %c0_i32_0 = arith.constant 0 : i32
    %c0_i32_1 = arith.constant 0 : i32
    return %c0_i32, %c0_i32_0 : i32, i32
  }
  func.func @transform_2(%arg0: i32) -> (i32, i32) {
    %c0_i32 = arith.constant 0 : i32
    %c0_i32_0 = arith.constant 0 : i32
    %c0_i32_1 = arith.constant 0 : i32
    return %c0_i32, %c0_i32_0 : i32, i32
  }
  func.func @transform_3(%arg0: i32) -> (i32, i32) {
    %c0_i32 = arith.constant 0 : i32
    %c0_i32_0 = arith.constant 0 : i32
    %c0_i32_1 = arith.constant 0 : i32
    return %c0_i32, %c0_i32_0 : i32, i32
  }
  func.func @transform_4(%arg0: i32) -> (i32, i32) {
    %c0_i32 = arith.constant 0 : i32
    %c0_i32_0 = arith.constant 0 : i32
    %c0_i32_1 = arith.constant 0 : i32
    return %c0_i32, %c0_i32_0 : i32, i32
  }
  func.func @transform_5(%arg0: i32) -> (i32, i32) {
    %c0_i32 = arith.constant 0 : i32
    %c0_i32_0 = arith.constant 0 : i32
    %c0_i32_1 = arith.constant 0 : i32
    return %c0_i32, %c0_i32_0 : i32, i32
  }
  func.func @transform_6(%arg0: i32) -> (i32, i32) {
    %c0_i32 = arith.constant 0 : i32
    %c0_i32_0 = arith.constant 0 : i32
    return %arg0, %c0_i32 : i32, i32
  }
}

</mosaic_0001>

<llo_original>
// kernel: tpu_custom_call.1
$region0: #{tpu_custom_call.1}
  #allocation0 [shape = 'u32[]', space=smem, size = 0x4, offset = 0x4, fixed_abs, tag = 'smem constant byte address 0x4 - core index']
  #allocation1 [shape = 'u32[72,128]{1,0:T(1,128)}', space=vmem, size = 0x9000, scoped, tag = 'internal scratch']
  %s0 = inlined_call_operand.hbm [shape: f32[2,128], index: 0, kind: input, shape index: {}]
  %s1 = inlined_call_operand.hbm [shape: f32[128,512], index: 1, kind: input, shape index: {}]
  %s2 = inlined_call_operand.hbm [shape: f32[512,256], index: 2, kind: input, shape index: {}]
  %s3 = inlined_call_operand.hbm [shape: f32[256,512], index: 3, kind: input, shape index: {}]
  %s4 = inlined_call_operand.hbm [shape: f32[512,128], index: 4, kind: input, shape index: {}]
  %s5 = inlined_call_operand.hbm [shape: f32[4,512], index: 5, kind: input, shape index: {}]
  %s6 = inlined_call_operand.hbm [shape: f32[2,128], index: 6, kind: output, shape index: {}]
  %s7 = sld [smem:[#allocation0]]
  $region58: #{tpu_custom_call.1} parent=0
    _
  %s9 = ssub.s32 1, %s7
  %s10 = scalar_select 0, %s9, %s7
  $region1: #{tpu_custom_call.1} parent=0
    #allocation2 [shape = 'u8[1024]{0}', space=vmem, size = 0x400, scoped, tag = 'input window, operand 0, single buffered']
    #allocation3 [shape = 's32[1]{0}', space=sflag, size = 0x4, scoped, tag = 'scoped memory for tpu_custom_call.1']
    #allocation4 [shape = 's32[1]{0}', space=sflag, size = 0x4, scoped, tag = 'scoped memory for tpu_custom_call.1']
    #allocation5 [shape = 'u8[262144]{0}', space=vmem, size = 0x40000, scoped, tag = 'input window, operand 1, single buffered']
    #allocation6 [shape = 's32[1]{0}', space=sflag, size = 0x4, scoped, tag = 'scoped memory for tpu_custom_call.1']
    #allocation7 [shape = 'u8[524288]{0}', space=vmem, size = 0x80000, scoped, tag = 'input window, operand 2, single buffered']
    #allocation8 [shape = 'u8[524288]{0}', space=vmem, size = 0x80000, scoped, tag = 'input window, operand 3, single buffered']
    #allocation9 [shape = 's32[1]{0}', space=sflag, size = 0x4, scoped, tag = 'scoped memory for tpu_custom_call.1']
    #allocation10 [shape = 'u8[262144]{0}', space=vmem, size = 0x40000, scoped, tag = 'input window, operand 4, single buffered']
    #allocation11 [shape = 'u8[8192]{0}', space=vmem, size = 0x2000, scoped, tag = 'input window, operand 5, single buffered']
    #allocation12 [shape = 's32[1]{0}', space=sflag, size = 0x4, scoped, tag = 'scoped memory for tpu_custom_call.1']
    #allocation13 [shape = 'u8[1024]{0}', space=vmem, size = 0x400, scoped, tag = 'output window, operand 0, single buffered']
    %11 = vsyncpa [#allocation3], 0
    %12 = vsyncpa [#allocation6], 0
    %13 = vsyncpa [#allocation9], 0
    %14 = vsyncpa [#allocation12], 0
    %15 = vsyncpa [#allocation4], 0
    // Predicated region
    $region2: #{tpu_custom_call.1} parent=1 // pred_check
      _
    $region3: #{tpu_custom_call.1} parent=1 // pred_check_branch
      %17 = sbr.rel (0) target = $region5
    $region4: #{tpu_custom_call.1} parent=1 // pred_region
      %19 = vsyncadd [#allocation3], 0
      %s21 = sshll.u32 %s0, 4
      %s22 = int_to_ptr.hbm [resolvable:$true] %s21
      %s23 = sshll.u32 [#allocation2], 4
      %s24 = int_to_ptr.vmem [resolvable:$true] %s23
      %26 = dma.hbm_to_vmem [thread:$0]  %s22, 32, %s24, [#allocation3]
    $region5: #{tpu_custom_call.1} parent=1 // pred_fallthru
      _
    // Predicated region
    $region6: #{tpu_custom_call.1} parent=1 // pred_check
      _
    $region7: #{tpu_custom_call.1} parent=1 // pred_check_branch
      %28 = sbr.rel (0) target = $region9
    $region8: #{tpu_custom_call.1} parent=1 // pred_region
      %30 = vsyncadd [#allocation6], 0
      %s31 = sshll.u32 %s1, 4
      %s32 = int_to_ptr.hbm [resolvable:$true] %s31
      %s33 = sshll.u32 [#allocation5], 4
      %s34 = int_to_ptr.vmem [resolvable:$true] %s33
      %39 = dma.hbm_to_vmem [thread:$0]  %s32, 8192, %s34, [#allocation6], 512, 512, 32
    $region9: #{tpu_custom_call.1} parent=1 // pred_fallthru
      _
    // Predicated region
    $region10: #{tpu_custom_call.1} parent=1 // pred_check
      _
    $region11: #{tpu_custom_call.1} parent=1 // pred_check_branch
      %41 = sbr.rel (0) target = $region13
    $region12: #{tpu_custom_call.1} parent=1 // pred_region
      %43 = vsyncadd [#allocation6], 0
      %s44 = sshll.u32 %s2, 4
      %s45 = int_to_ptr.hbm [resolvable:$true] %s44
      %s46 = sshll.u32 [#allocation7], 4
      %s47 = int_to_ptr.vmem [resolvable:$true] %s46
      %52 = dma.hbm_to_vmem [thread:$0]  %s45, 16384, %s47, [#allocation6], 256, 256, 16
    $region13: #{tpu_custom_call.1} parent=1 // pred_fallthru
      _
    // Predicated region
    $region14: #{tpu_custom_call.1} parent=1 // pred_check
      _
    $region15: #{tpu_custom_call.1} parent=1 // pred_check_branch
      %54 = sbr.rel (0) target = $region17
    $region16: #{tpu_custom_call.1} parent=1 // pred_region
      %56 = vsyncadd [#allocation9], 0
      %s57 = sshll.u32 %s3, 4
      %s58 = int_to_ptr.hbm [resolvable:$true] %s57
      %s59 = sshll.u32 [#allocation8], 4
      %s60 = int_to_ptr.vmem [resolvable:$true] %s59
      %65 = dma.hbm_to_vmem [thread:$0]  %s58, 16384, %s60, [#allocation9], 512, 512, 32
    $region17: #{tpu_custom_call.1} parent=1 // pred_fallthru
      _
    // Predicated region
    $region18: #{tpu_custom_call.1} parent=1 // pred_check
      _
    $region19: #{tpu_custom_call.1} parent=1 // pred_check_branch
      %67 = sbr.rel (0) target = $region21
    $region20: #{tpu_custom_call.1} parent=1 // pred_region
      %69 = vsyncadd [#allocation9], 0
      %s70 = sshll.u32 %s4, 4
      %s71 = int_to_ptr.hbm [resolvable:$true] %s70
      %s72 = sshll.u32 [#allocation10], 4
      %s73 = int_to_ptr.vmem [resolvable:$true] %s72
      %78 = dma.hbm_to_vmem [thread:$0]  %s71, 8192, %s73, [#allocation9], 128, 128, 8
    $region21: #{tpu_custom_call.1} parent=1 // pred_fallthru
      _
    // Predicated region
    $region22: #{tpu_custom_call.1} parent=1 // pred_check
      _
    $region23: #{tpu_custom_call.1} parent=1 // pred_check_branch
      %80 = sbr.rel (0) target = $region25
    $region24: #{tpu_custom_call.1} parent=1 // pred_region
      %82 = vsyncadd [#allocation12], 0
      %s84 = sshll.u32 %s5, 4
      %s85 = int_to_ptr.hbm [resolvable:$true] %s84
      %s86 = sshll.u32 [#allocation11], 4
      %s87 = int_to_ptr.vmem [resolvable:$true] %s86
      %89 = dma.hbm_to_vmem [thread:$0]  %s85, 256, %s87, [#allocation12]
    $region25: #{tpu_custom_call.1} parent=1 // pred_fallthru
      _
    // Predicated region
    $region26: #{tpu_custom_call.1} parent=1 // pred_check
      _
    $region27: #{tpu_custom_call.1} parent=1 // pred_check_branch
      %91 = sbr.rel (0) target = $region29
    $region28: #{tpu_custom_call.1} parent=1 // pred_region
      %93 = dma.done [#allocation3], 32
    $region29: #{tpu_custom_call.1} parent=1 // pred_fallthru
      _
    // Predicated region
    $region30: #{tpu_custom_call.1} parent=1 // pred_check
      _
    $region31: #{tpu_custom_call.1} parent=1 // pred_check_branch
      %95 = sbr.rel (0) target = $region33
    $region32: #{tpu_custom_call.1} parent=1 // pred_region
      %97 = dma.done [#allocation6], 8192
    $region33: #{tpu_custom_call.1} parent=1 // pred_fallthru
      _
    // Predicated region
    $region34: #{tpu_custom_call.1} parent=1 // pred_check
      _
    $region35: #{tpu_custom_call.1} parent=1 // pred_check_branch
      %99 = sbr.rel (0) target = $region37
    $region36: #{tpu_custom_call.1} parent=1 // pred_region
      %101 = dma.done [#allocation6], 16384
    $region37: #{tpu_custom_call.1} parent=1 // pred_fallthru
      _
    // Predicated region
    $region38: #{tpu_custom_call.1} parent=1 // pred_check
      _
    $region39: #{tpu_custom_call.1} parent=1 // pred_check_branch
      %103 = sbr.rel (0) target = $region41
    $region40: #{tpu_custom_call.1} parent=1 // pred_region
      %105 = dma.done [#allocation9], 16384
    $region41: #{tpu_custom_call.1} parent=1 // pred_fallthru
      _
    // Predicated region
    $region42: #{tpu_custom_call.1} parent=1 // pred_check
      _
    $region43: #{tpu_custom_call.1} parent=1 // pred_check_branch
      %107 = sbr.rel (0) target = $region45
    $region44: #{tpu_custom_call.1} parent=1 // pred_region
      %109 = dma.done [#allocation9], 8192
    $region45: #{tpu_custom_call.1} parent=1 // pred_fallthru
      _
    // Predicated region
    $region46: #{tpu_custom_call.1} parent=1 // pred_check
      _
    $region47: #{tpu_custom_call.1} parent=1 // pred_check_branch
      %111 = sbr.rel (0) target = $region49
    $region48: #{tpu_custom_call.1} parent=1 // pred_region
      %113 = dma.done [#allocation12], 256
    $region49: #{tpu_custom_call.1} parent=1 // pred_fallthru
      _
    %v114 = vld [vmem:[#allocation2] sm:$0x3]
    %v115 = vld [vmem:[#allocation5] sm:$0xff]
    %v116 = vld [vmem:[#allocation5 + $0x8] sm:$0xff]
    %v117 = vld [vmem:[#allocation5 + $0x10] sm:$0xff]
    %v118 = vld [vmem:[#allocation5 + $0x18] sm:$0xff]
    %v119 = vld [vmem:[#allocation5 + $0x20] sm:$0xff]
    %v120 = vld [vmem:[#allocation5 + $0x28] sm:$0xff]
    %v121 = vld [vmem:[#allocation5 + $0x30] sm:$0xff]
    %v122 = vld [vmem:[#allocation5 + $0x38] sm:$0xff]
    %v123 = vld [vmem:[#allocation5 + $0x40] sm:$0xff]
    %v124 = vld [vmem:[#allocation5 + $0x48] sm:$0xff]
    %v125 = vld [vmem:[#allocation5 + $0x50] sm:$0xff]
    %v126 = vld [vmem:[#allocation5 + $0x58] sm:$0xff]
    %v127 = vld [vmem:[#allocation5 + $0x60] sm:$0xff]
    %v128 = vld [vmem:[#allocation5 + $0x68] sm:$0xff]
    %v129 = vld [vmem:[#allocation5 + $0x70] sm:$0xff]
    %v130 = vld [vmem:[#allocation5 + $0x78] sm:$0xff]
    %v131 = vld [vmem:[#allocation5 + $0x80] sm:$0xff]
    %v132 = vld [vmem:[#allocation5 + $0x88] sm:$0xff]
    %v133 = vld [vmem:[#allocation5 + $0x90] sm:$0xff]
    %v134 = vld [vmem:[#allocation5 + $0x98] sm:$0xff]
    %v135 = vld [vmem:[#allocation5 + $0xa0] sm:$0xff]
    %v136 = vld [vmem:[#allocation5 + $0xa8] sm:$0xff]
    %v137 = vld [vmem:[#allocation5 + $0xb0] sm:$0xff]
    %v138 = vld [vmem:[#allocation5 + $0xb8] sm:$0xff]
    %v139 = vld [vmem:[#allocation5 + $0xc0] sm:$0xff]
    %v140 = vld [vmem:[#allocation5 + $0xc8] sm:$0xff]
    %v141 = vld [vmem:[#allocation5 + $0xd0] sm:$0xff]
    %v142 = vld [vmem:[#allocation5 + $0xd8] sm:$0xff]
    %v143 = vld [vmem:[#allocation5 + $0xe0] sm:$0xff]
    %v144 = vld [vmem:[#allocation5 + $0xe8] sm:$0xff]
    %v145 = vld [vmem:[#allocation5 + $0xf0] sm:$0xff]
    %v146 = vld [vmem:[#allocation5 + $0xf8] sm:$0xff]
    %v147 = vld [vmem:[#allocation5 + $0x100] sm:$0xff]
    %v148 = vld [vmem:[#allocation5 + $0x108] sm:$0xff]
    %v149 = vld [vmem:[#allocation5 + $0x110] sm:$0xff]
    %v150 = vld [vmem:[#allocation5 + $0x118] sm:$0xff]
    %v151 = vld [vmem:[#allocation5 + $0x120] sm:$0xff]
    %v152 = vld [vmem:[#allocation5 + $0x128] sm:$0xff]
    %v153 = vld [vmem:[#allocation5 + $0x130] sm:$0xff]
    %v154 = vld [vmem:[#allocation5 + $0x138] sm:$0xff]
    %v155 = vld [vmem:[#allocation5 + $0x140] sm:$0xff]
    %v156 = vld [vmem:[#allocation5 + $0x148] sm:$0xff]
    %v157 = vld [vmem:[#allocation5 + $0x150] sm:$0xff]
    %v158 = vld [vmem:[#allocation5 + $0x158] sm:$0xff]
    %v159 = vld [vmem:[#allocation5 + $0x160] sm:$0xff]
    %v160 = vld [vmem:[#allocation5 + $0x168] sm:$0xff]
    %v161 = vld [vmem:[#allocation5 + $0x170] sm:$0xff]
    %v162 = vld [vmem:[#allocation5 + $0x178] sm:$0xff]
    %v163 = vld [vmem:[#allocation5 + $0x180] sm:$0xff]
    %v164 = vld [vmem:[#allocation5 + $0x188] sm:$0xff]
    %v165 = vld [vmem:[#allocation5 + $0x190] sm:$0xff]
    %v166 = vld [vmem:[#allocation5 + $0x198] sm:$0xff]
    %v167 = vld [vmem:[#allocation5 + $0x1a0] sm:$0xff]
    %v168 = vld [vmem:[#allocation5 + $0x1a8] sm:$0xff]
    %v169 = vld [vmem:[#allocation5 + $0x1b0] sm:$0xff]
    %v170 = vld [vmem:[#allocation5 + $0x1b8] sm:$0xff]
    %v171 = vld [vmem:[#allocation5 + $0x1c0] sm:$0xff]
    %v172 = vld [vmem:[#allocation5 + $0x1c8] sm:$0xff]
    %v173 = vld [vmem:[#allocation5 + $0x1d0] sm:$0xff]
    %v174 = vld [vmem:[#allocation5 + $0x1d8] sm:$0xff]
    %v175 = vld [vmem:[#allocation5 + $0x1e0] sm:$0xff]
    %v176 = vld [vmem:[#allocation5 + $0x1e8] sm:$0xff]
    %v177 = vld [vmem:[#allocation5 + $0x1f0] sm:$0xff]
    %v178 = vld [vmem:[#allocation5 + $0x1f8] sm:$0xff]
    %v179 = vld [vmem:[#allocation11] ss:$4 sm:$0xf]
    %v181 = vperm.slane %v179, 0
    %v182 = vperm.slane %v179, 1
    %v183 = vperm.slane %v179, 2
    %v184 = vperm.slane %v179, 3
    %189 = vmatpush.msra.mxu0 %v175
    %190 = vmatpush.msra.mxu0 %v171
    %191 = vmatpush.msra.mxu0 %v167
    %192 = vmatpush.msra.mxu0 %v163
    %193 = vmatpush.msra.mxu0 %v159
    %194 = vmatpush.msra.mxu0 %v155
    %195 = vmatpush.msra.mxu0 %v151
    %196 = vmatpush.msra.mxu0 %v147
    %197 = vmatpush.msra.mxu0 %v143
    %198 = vmatpush.msra.mxu0 %v139
    %199 = vmatpush.msra.mxu0 %v135
    %200 = vmatpush.msra.mxu0 %v131
    %201 = vmatpush.msra.mxu0 %v127
    %202 = vmatpush.msra.mxu0 %v123
    %203 = vmatpush.msra.mxu0 %v119
    %204 = vmatpush.msra.mxu0 %v115
    %205 = vmatmul.f32.gmra.mxu0 %v114
    %v206 = vpop.f32.mrf.mxu0
    %v207 = vadd.f32 %v181, %v206
    %208 = vdwg.mxu0
    %209 = vmatpush.msra.mxu0 %v176
    %210 = vmatpush.msra.mxu0 %v172
    %211 = vmatpush.msra.mxu0 %v168
    %212 = vmatpush.msra.mxu0 %v164
    %213 = vmatpush.msra.mxu0 %v160
    %214 = vmatpush.msra.mxu0 %v156
    %215 = vmatpush.msra.mxu0 %v152
    %216 = vmatpush.msra.mxu0 %v148
    %217 = vmatpush.msra.mxu0 %v144
    %218 = vmatpush.msra.mxu0 %v140
    %219 = vmatpush.msra.mxu0 %v136
    %220 = vmatpush.msra.mxu0 %v132
    %221 = vmatpush.msra.mxu0 %v128
    %222 = vmatpush.msra.mxu0 %v124
    %223 = vmatpush.msra.mxu0 %v120
    %224 = vmatpush.msra.mxu0 %v116
    %225 = vmatmul.f32.gmra.mxu0 %v114
    %v226 = vpop.f32.mrf.mxu0
    %v227 = vadd.f32 %v182, %v226
    %228 = vdwg.mxu0
    %229 = vmatpush.msra.mxu0 %v177
    %230 = vmatpush.msra.mxu0 %v173
    %231 = vmatpush.msra.mxu0 %v169
    %232 = vmatpush.msra.mxu0 %v165
    %233 = vmatpush.msra.mxu0 %v161
    %234 = vmatpush.msra.mxu0 %v157
    %235 = vmatpush.msra.mxu0 %v153
    %236 = vmatpush.msra.mxu0 %v149
    %237 = vmatpush.msra.mxu0 %v145
    %238 = vmatpush.msra.mxu0 %v141
    %239 = vmatpush.msra.mxu0 %v137
    %240 = vmatpush.msra.mxu0 %v133
    %241 = vmatpush.msra.mxu0 %v129
    %242 = vmatpush.msra.mxu0 %v125
    %243 = vmatpush.msra.mxu0 %v121
    %244 = vmatpush.msra.mxu0 %v117
    %245 = vmatmul.f32.gmra.mxu0 %v114
    %v246 = vpop.f32.mrf.mxu0
    %v247 = vadd.f32 %v183, %v246
    %248 = vdwg.mxu0
    %249 = vmatpush.msra.mxu0 %v178
    %250 = vmatpush.msra.mxu0 %v174
    %251 = vmatpush.msra.mxu0 %v170
    %252 = vmatpush.msra.mxu0 %v166
    %253 = vmatpush.msra.mxu0 %v162
    %254 = vmatpush.msra.mxu0 %v158
    %255 = vmatpush.msra.mxu0 %v154
    %256 = vmatpush.msra.mxu0 %v150
    %257 = vmatpush.msra.mxu0 %v146
    %258 = vmatpush.msra.mxu0 %v142
    %259 = vmatpush.msra.mxu0 %v138
    %260 = vmatpush.msra.mxu0 %v134
    %261 = vmatpush.msra.mxu0 %v130
    %262 = vmatpush.msra.mxu0 %v126
    %263 = vmatpush.msra.mxu0 %v122
    %264 = vmatpush.msra.mxu0 %v118
    %265 = vmatmul.f32.gmra.mxu0 %v114
    %v266 = vpop.f32.mrf.mxu0
    %v267 = vadd.f32 %v184, %v266
    %268 = vdwg.mxu0
    %v269 = vmax.f32 %v207, 0.0
    %v270 = vmax.f32 %v227, 0.0
    %v271 = vmax.f32 %v247, 0.0
    %v272 = vmax.f32 %v267, 0.0
    %v273 = vld [vmem:[#allocation7] sm:$0xff]
    %v274 = vld [vmem:[#allocation7 + $0x8] sm:$0xff]
    %v275 = vld [vmem:[#allocation7 + $0x10] sm:$0xff]
    %v276 = vld [vmem:[#allocation7 + $0x18] sm:$0xff]
    %v277 = vld [vmem:[#allocation7 + $0x20] sm:$0xff]
    %v278 = vld [vmem:[#allocation7 + $0x28] sm:$0xff]
    %v279 = vld [vmem:[#allocation7 + $0x30] sm:$0xff]
    %v280 = vld [vmem:[#allocation7 + $0x38] sm:$0xff]
    %v281 = vld [vmem:[#allocation7 + $0x40] sm:$0xff]
    %v282 = vld [vmem:[#allocation7 + $0x48] sm:$0xff]
    %v283 = vld [vmem:[#allocation7 + $0x50] sm:$0xff]
    %v284 = vld [vmem:[#allocation7 + $0x58] sm:$0xff]
    %v285 = vld [vmem:[#allocation7 + $0x60] sm:$0xff]
    %v286 = vld [vmem:[#allocation7 + $0x68] sm:$0xff]
    %v287 = vld [vmem:[#allocation7 + $0x70] sm:$0xff]
    %v288 = vld [vmem:[#allocation7 + $0x78] sm:$0xff]
    %v289 = vld [vmem:[#allocation7 + $0x80] sm:$0xff]
    %v290 = vld [vmem:[#allocation7 + $0x88] sm:$0xff]
    %v291 = vld [vmem:[#allocation7 + $0x90] sm:$0xff]
    %v292 = vld [vmem:[#allocation7 + $0x98] sm:$0xff]
    %v293 = vld [vmem:[#allocation7 + $0xa0] sm:$0xff]
    %v294 = vld [vmem:[#allocation7 + $0xa8] sm:$0xff]
    %v295 = vld [vmem:[#allocation7 + $0xb0] sm:$0xff]
    %v296 = vld [vmem:[#allocation7 + $0xb8] sm:$0xff]
    %v297 = vld [vmem:[#allocation7 + $0xc0] sm:$0xff]
    %v298 = vld [vmem:[#allocation7 + $0xc8] sm:$0xff]
    %v299 = vld [vmem:[#allocation7 + $0xd0] sm:$0xff]
    %v300 = vld [vmem:[#allocation7 + $0xd8] sm:$0xff]
    %v301 = vld [vmem:[#allocation7 + $0xe0] sm:$0xff]
    %v302 = vld [vmem:[#allocation7 + $0xe8] sm:$0xff]
    %v303 = vld [vmem:[#allocation7 + $0xf0] sm:$0xff]
    %v304 = vld [vmem:[#allocation7 + $0xf8] sm:$0xff]
    %v305 = vld [vmem:[#allocation7 + $0x100] sm:$0xff]
    %v306 = vld [vmem:[#allocation7 + $0x108] sm:$0xff]
    %v307 = vld [vmem:[#allocation7 + $0x110] sm:$0xff]
    %v308 = vld [vmem:[#allocation7 + $0x118] sm:$0xff]
    %v309 = vld [vmem:[#allocation7 + $0x120] sm:$0xff]
    %v310 = vld [vmem:[#allocation7 + $0x128] sm:$0xff]
    %v311 = vld [vmem:[#allocation7 + $0x130] sm:$0xff]
    %v312 = vld [vmem:[#allocation7 + $0x138] sm:$0xff]
    %v313 = vld [vmem:[#allocation7 + $0x140] sm:$0xff]
    %v314 = vld [vmem:[#allocation7 + $0x148] sm:$0xff]
    %v315 = vld [vmem:[#allocation7 + $0x150] sm:$0xff]
    %v316 = vld [vmem:[#allocation7 + $0x158] sm:$0xff]
    %v317 = vld [vmem:[#allocation7 + $0x160] sm:$0xff]
    %v318 = vld [vmem:[#allocation7 + $0x168] sm:$0xff]
    %v319 = vld [vmem:[#allocation7 + $0x170] sm:$0xff]
    %v320 = vld [vmem:[#allocation7 + $0x178] sm:$0xff]
    %v321 = vld [vmem:[#allocation7 + $0x180] sm:$0xff]
    %v322 = vld [vmem:[#allocation7 + $0x188] sm:$0xff]
    %v323 = vld [vmem:[#allocation7 + $0x190] sm:$0xff]
    %v324 = vld [vmem:[#allocation7 + $0x198] sm:$0xff]
    %v325 = vld [vmem:[#allocation7 + $0x1a0] sm:$0xff]
    %v326 = vld [vmem:[#allocation7 + $0x1a8] sm:$0xff]
    %v327 = vld [vmem:[#allocation7 + $0x1b0] sm:$0xff]
    %v328 = vld [vmem:[#allocation7 + $0x1b8] sm:$0xff]
    %v329 = vld [vmem:[#allocation7 + $0x1c0] sm:$0xff]
    %v330 = vld [vmem:[#allocation7 + $0x1c8] sm:$0xff]
    %v331 = vld [vmem:[#allocation7 + $0x1d0] sm:$0xff]
    %v332 = vld [vmem:[#allocation7 + $0x1d8] sm:$0xff]
    %v333 = vld [vmem:[#allocation7 + $0x1e0] sm:$0xff]
    %v334 = vld [vmem:[#allocation7 + $0x1e8] sm:$0xff]
    %v335 = vld [vmem:[#allocation7 + $0x1f0] sm:$0xff]
    %v336 = vld [vmem:[#allocation7 + $0x1f8] sm:$0xff]
    %v337 = vld [vmem:[#allocation7 + $0x200] sm:$0xff]
    %v338 = vld [vmem:[#allocation7 + $0x208] sm:$0xff]
    %v339 = vld [vmem:[#allocation7 + $0x210] sm:$0xff]
    %v340 = vld [vmem:[#allocation7 + $0x218] sm:$0xff]
    %v341 = vld [vmem:[#allocation7 + $0x220] sm:$0xff]
    %v342 = vld [vmem:[#allocation7 + $0x228] sm:$0xff]
    %v343 = vld [vmem:[#allocation7 + $0x230] sm:$0xff]
    %v344 = vld [vmem:[#allocation7 + $0x238] sm:$0xff]
    %v345 = vld [vmem:[#allocation7 + $0x240] sm:$0xff]
    %v346 = vld [vmem:[#allocation7 + $0x248] sm:$0xff]
    %v347 = vld [vmem:[#allocation7 + $0x250] sm:$0xff]
    %v348 = vld [vmem:[#allocation7 + $0x258] sm:$0xff]
    %v349 = vld [vmem:[#allocation7 + $0x260] sm:$0xff]
    %v350 = vld [vmem:[#allocation7 + $0x268] sm:$0xff]
    %v351 = vld [vmem:[#allocation7 + $0x270] sm:$0xff]
    %v352 = vld [vmem:[#allocation7 + $0x278] sm:$0xff]
    %v353 = vld [vmem:[#allocation7 + $0x280] sm:$0xff]
    %v354 = vld [vmem:[#allocation7 + $0x288] sm:$0xff]
    %v355 = vld [vmem:[#allocation7 + $0x290] sm:$0xff]
    %v356 = vld [vmem:[#allocation7 + $0x298] sm:$0xff]
    %v357 = vld [vmem:[#allocation7 + $0x2a0] sm:$0xff]
    %v358 = vld [vmem:[#allocation7 + $0x2a8] sm:$0xff]
    %v359 = vld [vmem:[#allocation7 + $0x2b0] sm:$0xff]
    %v360 = vld [vmem:[#allocation7 + $0x2b8] sm:$0xff]
    %v361 = vld [vmem:[#allocation7 + $0x2c0] sm:$0xff]
    %v362 = vld [vmem:[#allocation7 + $0x2c8] sm:$0xff]
    %v363 = vld [vmem:[#allocation7 + $0x2d0] sm:$0xff]
    %v364 = vld [vmem:[#allocation7 + $0x2d8] sm:$0xff]
    %v365 = vld [vmem:[#allocation7 + $0x2e0] sm:$0xff]
    %v366 = vld [vmem:[#allocation7 + $0x2e8] sm:$0xff]
    %v367 = vld [vmem:[#allocation7 + $0x2f0] sm:$0xff]
    %v368 = vld [vmem:[#allocation7 + $0x2f8] sm:$0xff]
    %v369 = vld [vmem:[#allocation7 + $0x300] sm:$0xff]
    %v370 = vld [vmem:[#allocation7 + $0x308] sm:$0xff]
    %v371 = vld [vmem:[#allocation7 + $0x310] sm:$0xff]
    %v372 = vld [vmem:[#allocation7 + $0x318] sm:$0xff]
    %v373 = vld [vmem:[#allocation7 + $0x320] sm:$0xff]
    %v374 = vld [vmem:[#allocation7 + $0x328] sm:$0xff]
    %v375 = vld [vmem:[#allocation7 + $0x330] sm:$0xff]
    %v376 = vld [vmem:[#allocation7 + $0x338] sm:$0xff]
    %v377 = vld [vmem:[#allocation7 + $0x340] sm:$0xff]
    %v378 = vld [vmem:[#allocation7 + $0x348] sm:$0xff]
    %v379 = vld [vmem:[#allocation7 + $0x350] sm:$0xff]
    %v380 = vld [vmem:[#allocation7 + $0x358] sm:$0xff]
    %v381 = vld [vmem:[#allocation7 + $0x360] sm:$0xff]
    %v382 = vld [vmem:[#allocation7 + $0x368] sm:$0xff]
    %v383 = vld [vmem:[#allocation7 + $0x370] sm:$0xff]
    %v384 = vld [vmem:[#allocation7 + $0x378] sm:$0xff]
    %v385 = vld [vmem:[#allocation7 + $0x380] sm:$0xff]
    %v386 = vld [vmem:[#allocation7 + $0x388] sm:$0xff]
    %v387 = vld [vmem:[#allocation7 + $0x390] sm:$0xff]
    %v388 = vld [vmem:[#allocation7 + $0x398] sm:$0xff]
    %v389 = vld [vmem:[#allocation7 + $0x3a0] sm:$0xff]
    %v390 = vld [vmem:[#allocation7 + $0x3a8] sm:$0xff]
    %v391 = vld [vmem:[#allocation7 + $0x3b0] sm:$0xff]
    %v392 = vld [vmem:[#allocation7 + $0x3b8] sm:$0xff]
    %v393 = vld [vmem:[#allocation7 + $0x3c0] sm:$0xff]
    %v394 = vld [vmem:[#allocation7 + $0x3c8] sm:$0xff]
    %v395 = vld [vmem:[#allocation7 + $0x3d0] sm:$0xff]
    %v396 = vld [vmem:[#allocation7 + $0x3d8] sm:$0xff]
    %v397 = vld [vmem:[#allocation7 + $0x3e0] sm:$0xff]
    %v398 = vld [vmem:[#allocation7 + $0x3e8] sm:$0xff]
    %v399 = vld [vmem:[#allocation7 + $0x3f0] sm:$0xff]
    %v400 = vld [vmem:[#allocation7 + $0x3f8] sm:$0xff]
    %s401 = scalar_lea.vmem [#allocation11], 1
    %v402 = vld [vmem:[%s401] ss:$4 sm:$0x3]
    %v404 = vperm.slane %v402, 0
    %v405 = vperm.slane %v402, 1
    %408 = vmatpush.msra.mxu0 %v303
    %409 = vmatpush.msra.mxu0 %v301
    %410 = vmatpush.msra.mxu0 %v299
    %411 = vmatpush.msra.mxu0 %v297
    %412 = vmatpush.msra.mxu0 %v295
    %413 = vmatpush.msra.mxu0 %v293
    %414 = vmatpush.msra.mxu0 %v291
    %415 = vmatpush.msra.mxu0 %v289
    %416 = vmatpush.msra.mxu0 %v287
    %417 = vmatpush.msra.mxu0 %v285
    %418 = vmatpush.msra.mxu0 %v283
    %419 = vmatpush.msra.mxu0 %v281
    %420 = vmatpush.msra.mxu0 %v279
    %421 = vmatpush.msra.mxu0 %v277
    %422 = vmatpush.msra.mxu0 %v275
    %423 = vmatpush.msra.mxu0 %v273
    %424 = vmatmul.f32.gmra.mxu0 %v269
    %v425 = vpop.f32.mrf.mxu0
    %v426 = vadd.f32 %v404, %v425
    %427 = vdwg.mxu0
    %428 = vmatpush.msra.mxu0 %v335
    %429 = vmatpush.msra.mxu0 %v333
    %430 = vmatpush.msra.mxu0 %v331
    %431 = vmatpush.msra.mxu0 %v329
    %432 = vmatpush.msra.mxu0 %v327
    %433 = vmatpush.msra.mxu0 %v325
    %434 = vmatpush.msra.mxu0 %v323
    %435 = vmatpush.msra.mxu0 %v321
    %436 = vmatpush.msra.mxu0 %v319
    %437 = vmatpush.msra.mxu0 %v317
    %438 = vmatpush.msra.mxu0 %v315
    %439 = vmatpush.msra.mxu0 %v313
    %440 = vmatpush.msra.mxu0 %v311
    %441 = vmatpush.msra.mxu0 %v309
    %442 = vmatpush.msra.mxu0 %v307
    %443 = vmatpush.msra.mxu0 %v305
    %444 = vmatmul.f32.gmra.mxu0 %v270
    %v445 = vpop.f32.mrf.mxu0
    %v446 = vadd.f32 %v426, %v445
    %447 = vdwg.mxu0
    %448 = vmatpush.msra.mxu0 %v367
    %449 = vmatpush.msra.mxu0 %v365
    %450 = vmatpush.msra.mxu0 %v363
    %451 = vmatpush.msra.mxu0 %v361
    %452 = vmatpush.msra.mxu0 %v359
    %453 = vmatpush.msra.mxu0 %v357
    %454 = vmatpush.msra.mxu0 %v355
    %455 = vmatpush.msra.mxu0 %v353
    %456 = vmatpush.msra.mxu0 %v351
    %457 = vmatpush.msra.mxu0 %v349
    %458 = vmatpush.msra.mxu0 %v347
    %459 = vmatpush.msra.mxu0 %v345
    %460 = vmatpush.msra.mxu0 %v343
    %461 = vmatpush.msra.mxu0 %v341
    %462 = vmatpush.msra.mxu0 %v339
    %463 = vmatpush.msra.mxu0 %v337
    %464 = vmatmul.f32.gmra.mxu0 %v271
    %v465 = vpop.f32.mrf.mxu0
    %v466 = vadd.f32 %v446, %v465
    %467 = vdwg.mxu0
    %468 = vmatpush.msra.mxu0 %v399
    %469 = vmatpush.msra.mxu0 %v397
    %470 = vmatpush.msra.mxu0 %v395
    %471 = vmatpush.msra.mxu0 %v393
    %472 = vmatpush.msra.mxu0 %v391
    %473 = vmatpush.msra.mxu0 %v389
    %474 = vmatpush.msra.mxu0 %v387
    %475 = vmatpush.msra.mxu0 %v385
    %476 = vmatpush.msra.mxu0 %v383
    %477 = vmatpush.msra.mxu0 %v381
    %478 = vmatpush.msra.mxu0 %v379
    %479 = vmatpush.msra.mxu0 %v377
    %480 = vmatpush.msra.mxu0 %v375
    %481 = vmatpush.msra.mxu0 %v373
    %482 = vmatpush.msra.mxu0 %v371
    %483 = vmatpush.msra.mxu0 %v369
    %484 = vmatmul.f32.gmra.mxu0 %v272
    %v485 = vpop.f32.mrf.mxu0
    %v486 = vadd.f32 %v466, %v485
    %487 = vdwg.mxu0
    %488 = vmatpush.msra.mxu0 %v304
    %489 = vmatpush.msra.mxu0 %v302
    %490 = vmatpush.msra.mxu0 %v300
    %491 = vmatpush.msra.mxu0 %v298
    %492 = vmatpush.msra.mxu0 %v296
    %493 = vmatpush.msra.mxu0 %v294
    %494 = vmatpush.msra.mxu0 %v292
    %495 = vmatpush.msra.mxu0 %v290
    %496 = vmatpush.msra.mxu0 %v288
    %497 = vmatpush.msra.mxu0 %v286
    %498 = vmatpush.msra.mxu0 %v284
    %499 = vmatpush.msra.mxu0 %v282
    %500 = vmatpush.msra.mxu0 %v280
    %501 = vmatpush.msra.mxu0 %v278
    %502 = vmatpush.msra.mxu0 %v276
    %503 = vmatpush.msra.mxu0 %v274
    %504 = vmatmul.f32.gmra.mxu0 %v269
    %v505 = vpop.f32.mrf.mxu0
    %v506 = vadd.f32 %v405, %v505
    %507 = vdwg.mxu0
    %508 = vmatpush.msra.mxu0 %v336
    %509 = vmatpush.msra.mxu0 %v334
    %510 = vmatpush.msra.mxu0 %v332
    %511 = vmatpush.msra.mxu0 %v330
    %512 = vmatpush.msra.mxu0 %v328
    %513 = vmatpush.msra.mxu0 %v326
    %514 = vmatpush.msra.mxu0 %v324
    %515 = vmatpush.msra.mxu0 %v322
    %516 = vmatpush.msra.mxu0 %v320
    %517 = vmatpush.msra.mxu0 %v318
    %518 = vmatpush.msra.mxu0 %v316
    %519 = vmatpush.msra.mxu0 %v314
    %520 = vmatpush.msra.mxu0 %v312
    %521 = vmatpush.msra.mxu0 %v310
    %522 = vmatpush.msra.mxu0 %v308
    %523 = vmatpush.msra.mxu0 %v306
    %524 = vmatmul.f32.gmra.mxu0 %v270
    %v525 = vpop.f32.mrf.mxu0
    %v526 = vadd.f32 %v506, %v525
    %527 = vdwg.mxu0
    %528 = vmatpush.msra.mxu0 %v368
    %529 = vmatpush.msra.mxu0 %v366
    %530 = vmatpush.msra.mxu0 %v364
    %531 = vmatpush.msra.mxu0 %v362
    %532 = vmatpush.msra.mxu0 %v360
    %533 = vmatpush.msra.mxu0 %v358
    %534 = vmatpush.msra.mxu0 %v356
    %535 = vmatpush.msra.mxu0 %v354
    %536 = vmatpush.msra.mxu0 %v352
    %537 = vmatpush.msra.mxu0 %v350
    %538 = vmatpush.msra.mxu0 %v348
    %539 = vmatpush.msra.mxu0 %v346
    %540 = vmatpush.msra.mxu0 %v344
    %541 = vmatpush.msra.mxu0 %v342
    %542 = vmatpush.msra.mxu0 %v340
    %543 = vmatpush.msra.mxu0 %v338
    %544 = vmatmul.f32.gmra.mxu0 %v271
    %v545 = vpop.f32.mrf.mxu0
    %v546 = vadd.f32 %v526, %v545
    %547 = vdwg.mxu0
    %548 = vmatpush.msra.mxu0 %v400
    %549 = vmatpush.msra.mxu0 %v398
    %550 = vmatpush.msra.mxu0 %v396
    %551 = vmatpush.msra.mxu0 %v394
    %552 = vmatpush.msra.mxu0 %v392
    %553 = vmatpush.msra.mxu0 %v390
    %554 = vmatpush.msra.mxu0 %v388
    %555 = vmatpush.msra.mxu0 %v386
    %556 = vmatpush.msra.mxu0 %v384
    %557 = vmatpush.msra.mxu0 %v382
    %558 = vmatpush.msra.mxu0 %v380
    %559 = vmatpush.msra.mxu0 %v378
    %560 = vmatpush.msra.mxu0 %v376
    %561 = vmatpush.msra.mxu0 %v374
    %562 = vmatpush.msra.mxu0 %v372
    %563 = vmatpush.msra.mxu0 %v370
    %564 = vmatmul.f32.gmra.mxu0 %v272
    %v565 = vpop.f32.mrf.mxu0
    %v566 = vadd.f32 %v546, %v565
    %567 = vdwg.mxu0
    %v568 = vmax.f32 %v486, 0.0
    %v569 = vmax.f32 %v566, 0.0
    %v570 = vld [vmem:[#allocation8] sm:$0xff]
    %v571 = vld [vmem:[#allocation8 + $0x8] sm:$0xff]
    %v572 = vld [vmem:[#allocation8 + $0x10] sm:$0xff]
    %v573 = vld [vmem:[#allocation8 + $0x18] sm:$0xff]
    %v574 = vld [vmem:[#allocation8 + $0x20] sm:$0xff]
    %v575 = vld [vmem:[#allocation8 + $0x28] sm:$0xff]
    %v576 = vld [vmem:[#allocation8 + $0x30] sm:$0xff]
    %v577 = vld [vmem:[#allocation8 + $0x38] sm:$0xff]
    %v578 = vld [vmem:[#allocation8 + $0x40] sm:$0xff]
    %v579 = vld [vmem:[#allocation8 + $0x48] sm:$0xff]
    %v580 = vld [vmem:[#allocation8 + $0x50] sm:$0xff]
    %v581 = vld [vmem:[#allocation8 + $0x58] sm:$0xff]
    %v582 = vld [vmem:[#allocation8 + $0x60] sm:$0xff]
    %v583 = vld [vmem:[#allocation8 + $0x68] sm:$0xff]
    %v584 = vld [vmem:[#allocation8 + $0x70] sm:$0xff]
    %v585 = vld [vmem:[#allocation8 + $0x78] sm:$0xff]
    %v586 = vld [vmem:[#allocation8 + $0x80] sm:$0xff]
    %v587 = vld [vmem:[#allocation8 + $0x88] sm:$0xff]
    %v588 = vld [vmem:[#allocation8 + $0x90] sm:$0xff]
    %v589 = vld [vmem:[#allocation8 + $0x98] sm:$0xff]
    %v590 = vld [vmem:[#allocation8 + $0xa0] sm:$0xff]
    %v591 = vld [vmem:[#allocation8 + $0xa8] sm:$0xff]
    %v592 = vld [vmem:[#allocation8 + $0xb0] sm:$0xff]
    %v593 = vld [vmem:[#allocation8 + $0xb8] sm:$0xff]
    %v594 = vld [vmem:[#allocation8 + $0xc0] sm:$0xff]
    %v595 = vld [vmem:[#allocation8 + $0xc8] sm:$0xff]
    %v596 = vld [vmem:[#allocation8 + $0xd0] sm:$0xff]
    %v597 = vld [vmem:[#allocation8 + $0xd8] sm:$0xff]
    %v598 = vld [vmem:[#allocation8 + $0xe0] sm:$0xff]
    %v599 = vld [vmem:[#allocation8 + $0xe8] sm:$0xff]
    %v600 = vld [vmem:[#allocation8 + $0xf0] sm:$0xff]
    %v601 = vld [vmem:[#allocation8 + $0xf8] sm:$0xff]
    %v602 = vld [vmem:[#allocation8 + $0x100] sm:$0xff]
    %v603 = vld [vmem:[#allocation8 + $0x108] sm:$0xff]
    %v604 = vld [vmem:[#allocation8 + $0x110] sm:$0xff]
    %v605 = vld [vmem:[#allocation8 + $0x118] sm:$0xff]
    %v606 = vld [vmem:[#allocation8 + $0x120] sm:$0xff]
    %v607 = vld [vmem:[#allocation8 + $0x128] sm:$0xff]
    %v608 = vld [vmem:[#allocation8 + $0x130] sm:$0xff]
    %v609 = vld [vmem:[#allocation8 + $0x138] sm:$0xff]
    %v610 = vld [vmem:[#allocation8 + $0x140] sm:$0xff]
    %v611 = vld [vmem:[#allocation8 + $0x148] sm:$0xff]
    %v612 = vld [vmem:[#allocation8 + $0x150] sm:$0xff]
    %v613 = vld [vmem:[#allocation8 + $0x158] sm:$0xff]
    %v614 = vld [vmem:[#allocation8 + $0x160] sm:$0xff]
    %v615 = vld [vmem:[#allocation8 + $0x168] sm:$0xff]
    %v616 = vld [vmem:[#allocation8 + $0x170] sm:$0xff]
    %v617 = vld [vmem:[#allocation8 + $0x178] sm:$0xff]
    %v618 = vld [vmem:[#allocation8 + $0x180] sm:$0xff]
    %v619 = vld [vmem:[#allocation8 + $0x188] sm:$0xff]
    %v620 = vld [vmem:[#allocation8 + $0x190] sm:$0xff]
    %v621 = vld [vmem:[#allocation8 + $0x198] sm:$0xff]
    %v622 = vld [vmem:[#allocation8 + $0x1a0] sm:$0xff]
    %v623 = vld [vmem:[#allocation8 + $0x1a8] sm:$0xff]
    %v624 = vld [vmem:[#allocation8 + $0x1b0] sm:$0xff]
    %v625 = vld [vmem:[#allocation8 + $0x1b8] sm:$0xff]
    %v626 = vld [vmem:[#allocation8 + $0x1c0] sm:$0xff]
    %v627 = vld [vmem:[#allocation8 + $0x1c8] sm:$0xff]
    %v628 = vld [vmem:[#allocation8 + $0x1d0] sm:$0xff]
    %v629 = vld [vmem:[#allocation8 + $0x1d8] sm:$0xff]
    %v630 = vld [vmem:[#allocation8 + $0x1e0] sm:$0xff]
    %v631 = vld [vmem:[#allocation8 + $0x1e8] sm:$0xff]
    %v632 = vld [vmem:[#allocation8 + $0x1f0] sm:$0xff]
    %v633 = vld [vmem:[#allocation8 + $0x1f8] sm:$0xff]
    %v634 = vld [vmem:[#allocation8 + $0x200] sm:$0xff]
    %v635 = vld [vmem:[#allocation8 + $0x208] sm:$0xff]
    %v636 = vld [vmem:[#allocation8 + $0x210] sm:$0xff]
    %v637 = vld [vmem:[#allocation8 + $0x218] sm:$0xff]
    %v638 = vld [vmem:[#allocation8 + $0x220] sm:$0xff]
    %v639 = vld [vmem:[#allocation8 + $0x228] sm:$0xff]
    %v640 = vld [vmem:[#allocation8 + $0x230] sm:$0xff]
    %v641 = vld [vmem:[#allocation8 + $0x238] sm:$0xff]
    %v642 = vld [vmem:[#allocation8 + $0x240] sm:$0xff]
    %v643 = vld [vmem:[#allocation8 + $0x248] sm:$0xff]
    %v644 = vld [vmem:[#allocation8 + $0x250] sm:$0xff]
    %v645 = vld [vmem:[#allocation8 + $0x258] sm:$0xff]
    %v646 = vld [vmem:[#allocation8 + $0x260] sm:$0xff]
    %v647 = vld [vmem:[#allocation8 + $0x268] sm:$0xff]
    %v648 = vld [vmem:[#allocation8 + $0x270] sm:$0xff]
    %v649 = vld [vmem:[#allocation8 + $0x278] sm:$0xff]
    %v650 = vld [vmem:[#allocation8 + $0x280] sm:$0xff]
    %v651 = vld [vmem:[#allocation8 + $0x288] sm:$0xff]
    %v652 = vld [vmem:[#allocation8 + $0x290] sm:$0xff]
    %v653 = vld [vmem:[#allocation8 + $0x298] sm:$0xff]
    %v654 = vld [vmem:[#allocation8 + $0x2a0] sm:$0xff]
    %v655 = vld [vmem:[#allocation8 + $0x2a8] sm:$0xff]
    %v656 = vld [vmem:[#allocation8 + $0x2b0] sm:$0xff]
    %v657 = vld [vmem:[#allocation8 + $0x2b8] sm:$0xff]
    %v658 = vld [vmem:[#allocation8 + $0x2c0] sm:$0xff]
    %v659 = vld [vmem:[#allocation8 + $0x2c8] sm:$0xff]
    %v660 = vld [vmem:[#allocation8 + $0x2d0] sm:$0xff]
    %v661 = vld [vmem:[#allocation8 + $0x2d8] sm:$0xff]
    %v662 = vld [vmem:[#allocation8 + $0x2e0] sm:$0xff]
    %v663 = vld [vmem:[#allocation8 + $0x2e8] sm:$0xff]
    %v664 = vld [vmem:[#allocation8 + $0x2f0] sm:$0xff]
    %v665 = vld [vmem:[#allocation8 + $0x2f8] sm:$0xff]
    %v666 = vld [vmem:[#allocation8 + $0x300] sm:$0xff]
    %v667 = vld [vmem:[#allocation8 + $0x308] sm:$0xff]
    %v668 = vld [vmem:[#allocation8 + $0x310] sm:$0xff]
    %v669 = vld [vmem:[#allocation8 + $0x318] sm:$0xff]
    %v670 = vld [vmem:[#allocation8 + $0x320] sm:$0xff]
    %v671 = vld [vmem:[#allocation8 + $0x328] sm:$0xff]
    %v672 = vld [vmem:[#allocation8 + $0x330] sm:$0xff]
    %v673 = vld [vmem:[#allocation8 + $0x338] sm:$0xff]
    %v674 = vld [vmem:[#allocation8 + $0x340] sm:$0xff]
    %v675 = vld [vmem:[#allocation8 + $0x348] sm:$0xff]
    %v676 = vld [vmem:[#allocation8 + $0x350] sm:$0xff]
    %v677 = vld [vmem:[#allocation8 + $0x358] sm:$0xff]
    %v678 = vld [vmem:[#allocation8 + $0x360] sm:$0xff]
    %v679 = vld [vmem:[#allocation8 + $0x368] sm:$0xff]
    %v680 = vld [vmem:[#allocation8 + $0x370] sm:$0xff]
    %v681 = vld [vmem:[#allocation8 + $0x378] sm:$0xff]
    %v682 = vld [vmem:[#allocation8 + $0x380] sm:$0xff]
    %v683 = vld [vmem:[#allocation8 + $0x388] sm:$0xff]
    %v684 = vld [vmem:[#allocation8 + $0x390] sm:$0xff]
    %v685 = vld [vmem:[#allocation8 + $0x398] sm:$0xff]
    %v686 = vld [vmem:[#allocation8 + $0x3a0] sm:$0xff]
    %v687 = vld [vmem:[#allocation8 + $0x3a8] sm:$0xff]
    %v688 = vld [vmem:[#allocation8 + $0x3b0] sm:$0xff]
    %v689 = vld [vmem:[#allocation8 + $0x3b8] sm:$0xff]
    %v690 = vld [vmem:[#allocation8 + $0x3c0] sm:$0xff]
    %v691 = vld [vmem:[#allocation8 + $0x3c8] sm:$0xff]
    %v692 = vld [vmem:[#allocation8 + $0x3d0] sm:$0xff]
    %v693 = vld [vmem:[#allocation8 + $0x3d8] sm:$0xff]
    %v694 = vld [vmem:[#allocation8 + $0x3e0] sm:$0xff]
    %v695 = vld [vmem:[#allocation8 + $0x3e8] sm:$0xff]
    %v696 = vld [vmem:[#allocation8 + $0x3f0] sm:$0xff]
    %v697 = vld [vmem:[#allocation8 + $0x3f8] sm:$0xff]
    %s698 = scalar_lea.vmem [#allocation11], 2
    %v699 = vld [vmem:[%s698] ss:$4 sm:$0xf]
    %v701 = vperm.slane %v699, 0
    %v702 = vperm.slane %v699, 1
    %v703 = vperm.slane %v699, 2
    %v704 = vperm.slane %v699, 3
    %709 = vmatpush.msra.mxu0 %v630
    %710 = vmatpush.msra.mxu0 %v626
    %711 = vmatpush.msra.mxu0 %v622
    %712 = vmatpush.msra.mxu0 %v618
    %713 = vmatpush.msra.mxu0 %v614
    %714 = vmatpush.msra.mxu0 %v610
    %715 = vmatpush.msra.mxu0 %v606
    %716 = vmatpush.msra.mxu0 %v602
    %717 = vmatpush.msra.mxu0 %v598
    %718 = vmatpush.msra.mxu0 %v594
    %719 = vmatpush.msra.mxu0 %v590
    %720 = vmatpush.msra.mxu0 %v586
    %721 = vmatpush.msra.mxu0 %v582
    %722 = vmatpush.msra.mxu0 %v578
    %723 = vmatpush.msra.mxu0 %v574
    %724 = vmatpush.msra.mxu0 %v570
    %725 = vmatmul.f32.gmra.mxu0 %v568
    %v726 = vpop.f32.mrf.mxu0
    %v727 = vadd.f32 %v701, %v726
    %728 = vdwg.mxu0
    %729 = vmatpush.msra.mxu0 %v694
    %730 = vmatpush.msra.mxu0 %v690
    %731 = vmatpush.msra.mxu0 %v686
    %732 = vmatpush.msra.mxu0 %v682
    %733 = vmatpush.msra.mxu0 %v678
    %734 = vmatpush.msra.mxu0 %v674
    %735 = vmatpush.msra.mxu0 %v670
    %736 = vmatpush.msra.mxu0 %v666
    %737 = vmatpush.msra.mxu0 %v662
    %738 = vmatpush.msra.mxu0 %v658
    %739 = vmatpush.msra.mxu0 %v654
    %740 = vmatpush.msra.mxu0 %v650
    %741 = vmatpush.msra.mxu0 %v646
    %742 = vmatpush.msra.mxu0 %v642
    %743 = vmatpush.msra.mxu0 %v638
    %744 = vmatpush.msra.mxu0 %v634
    %745 = vmatmul.f32.gmra.mxu0 %v569
    %v746 = vpop.f32.mrf.mxu0
    %v747 = vadd.f32 %v727, %v746
    %748 = vdwg.mxu0
    %749 = vmatpush.msra.mxu0 %v631
    %750 = vmatpush.msra.mxu0 %v627
    %751 = vmatpush.msra.mxu0 %v623
    %752 = vmatpush.msra.mxu0 %v619
    %753 = vmatpush.msra.mxu0 %v615
    %754 = vmatpush.msra.mxu0 %v611
    %755 = vmatpush.msra.mxu0 %v607
    %756 = vmatpush.msra.mxu0 %v603
    %757 = vmatpush.msra.mxu0 %v599
    %758 = vmatpush.msra.mxu0 %v595
    %759 = vmatpush.msra.mxu0 %v591
    %760 = vmatpush.msra.mxu0 %v587
    %761 = vmatpush.msra.mxu0 %v583
    %762 = vmatpush.msra.mxu0 %v579
    %763 = vmatpush.msra.mxu0 %v575
    %764 = vmatpush.msra.mxu0 %v571
    %765 = vmatmul.f32.gmra.mxu0 %v568
    %v766 = vpop.f32.mrf.mxu0
    %v767 = vadd.f32 %v702, %v766
    %768 = vdwg.mxu0
    %769 = vmatpush.msra.mxu0 %v695
    %770 = vmatpush.msra.mxu0 %v691
    %771 = vmatpush.msra.mxu0 %v687
    %772 = vmatpush.msra.mxu0 %v683
    %773 = vmatpush.msra.mxu0 %v679
    %774 = vmatpush.msra.mxu0 %v675
    %775 = vmatpush.msra.mxu0 %v671
    %776 = vmatpush.msra.mxu0 %v667
    %777 = vmatpush.msra.mxu0 %v663
    %778 = vmatpush.msra.mxu0 %v659
    %779 = vmatpush.msra.mxu0 %v655
    %780 = vmatpush.msra.mxu0 %v651
    %781 = vmatpush.msra.mxu0 %v647
    %782 = vmatpush.msra.mxu0 %v643
    %783 = vmatpush.msra.mxu0 %v639
    %784 = vmatpush.msra.mxu0 %v635
    %785 = vmatmul.f32.gmra.mxu0 %v569
    %v786 = vpop.f32.mrf.mxu0
    %v787 = vadd.f32 %v767, %v786
    %788 = vdwg.mxu0
    %789 = vmatpush.msra.mxu0 %v632
    %790 = vmatpush.msra.mxu0 %v628
    %791 = vmatpush.msra.mxu0 %v624
    %792 = vmatpush.msra.mxu0 %v620
    %793 = vmatpush.msra.mxu0 %v616
    %794 = vmatpush.msra.mxu0 %v612
    %795 = vmatpush.msra.mxu0 %v608
    %796 = vmatpush.msra.mxu0 %v604
    %797 = vmatpush.msra.mxu0 %v600
    %798 = vmatpush.msra.mxu0 %v596
    %799 = vmatpush.msra.mxu0 %v592
    %800 = vmatpush.msra.mxu0 %v588
    %801 = vmatpush.msra.mxu0 %v584
    %802 = vmatpush.msra.mxu0 %v580
    %803 = vmatpush.msra.mxu0 %v576
    %804 = vmatpush.msra.mxu0 %v572
    %805 = vmatmul.f32.gmra.mxu0 %v568
    %v806 = vpop.f32.mrf.mxu0
    %v807 = vadd.f32 %v703, %v806
    %808 = vdwg.mxu0
    %809 = vmatpush.msra.mxu0 %v696
    %810 = vmatpush.msra.mxu0 %v692
    %811 = vmatpush.msra.mxu0 %v688
    %812 = vmatpush.msra.mxu0 %v684
    %813 = vmatpush.msra.mxu0 %v680
    %814 = vmatpush.msra.mxu0 %v676
    %815 = vmatpush.msra.mxu0 %v672
    %816 = vmatpush.msra.mxu0 %v668
    %817 = vmatpush.msra.mxu0 %v664
    %818 = vmatpush.msra.mxu0 %v660
    %819 = vmatpush.msra.mxu0 %v656
    %820 = vmatpush.msra.mxu0 %v652
    %821 = vmatpush.msra.mxu0 %v648
    %822 = vmatpush.msra.mxu0 %v644
    %823 = vmatpush.msra.mxu0 %v640
    %824 = vmatpush.msra.mxu0 %v636
    %825 = vmatmul.f32.gmra.mxu0 %v569
    %v826 = vpop.f32.mrf.mxu0
    %v827 = vadd.f32 %v807, %v826
    %828 = vdwg.mxu0
    %829 = vmatpush.msra.mxu0 %v633
    %830 = vmatpush.msra.mxu0 %v629
    %831 = vmatpush.msra.mxu0 %v625
    %832 = vmatpush.msra.mxu0 %v621
    %833 = vmatpush.msra.mxu0 %v617
    %834 = vmatpush.msra.mxu0 %v613
    %835 = vmatpush.msra.mxu0 %v609
    %836 = vmatpush.msra.mxu0 %v605
    %837 = vmatpush.msra.mxu0 %v601
    %838 = vmatpush.msra.mxu0 %v597
    %839 = vmatpush.msra.mxu0 %v593
    %840 = vmatpush.msra.mxu0 %v589
    %841 = vmatpush.msra.mxu0 %v585
    %842 = vmatpush.msra.mxu0 %v581
    %843 = vmatpush.msra.mxu0 %v577
    %844 = vmatpush.msra.mxu0 %v573
    %845 = vmatmul.f32.gmra.mxu0 %v568
    %v846 = vpop.f32.mrf.mxu0
    %v847 = vadd.f32 %v704, %v846
    %848 = vdwg.mxu0
    %849 = vmatpush.msra.mxu0 %v697
    %850 = vmatpush.msra.mxu0 %v693
    %851 = vmatpush.msra.mxu0 %v689
    %852 = vmatpush.msra.mxu0 %v685
    %853 = vmatpush.msra.mxu0 %v681
    %854 = vmatpush.msra.mxu0 %v677
    %855 = vmatpush.msra.mxu0 %v673
    %856 = vmatpush.msra.mxu0 %v669
    %857 = vmatpush.msra.mxu0 %v665
    %858 = vmatpush.msra.mxu0 %v661
    %859 = vmatpush.msra.mxu0 %v657
    %860 = vmatpush.msra.mxu0 %v653
    %861 = vmatpush.msra.mxu0 %v649
    %862 = vmatpush.msra.mxu0 %v645
    %863 = vmatpush.msra.mxu0 %v641
    %864 = vmatpush.msra.mxu0 %v637
    %865 = vmatmul.f32.gmra.mxu0 %v569
    %v866 = vpop.f32.mrf.mxu0
    %v867 = vadd.f32 %v847, %v866
    %868 = vdwg.mxu0
    %v869 = vmax.f32 %v747, 0.0
    %v870 = vmax.f32 %v787, 0.0
    %v871 = vmax.f32 %v827, 0.0
    %v872 = vmax.f32 %v867, 0.0
    %v873 = vld [vmem:[#allocation10] sm:$0xff]
    %v874 = vld [vmem:[#allocation10 + $0x8] sm:$0xff]
    %v875 = vld [vmem:[#allocation10 + $0x10] sm:$0xff]
    %v876 = vld [vmem:[#allocation10 + $0x18] sm:$0xff]
    %v877 = vld [vmem:[#allocation10 + $0x20] sm:$0xff]
    %v878 = vld [vmem:[#allocation10 + $0x28] sm:$0xff]
    %v879 = vld [vmem:[#allocation10 + $0x30] sm:$0xff]
    %v880 = vld [vmem:[#allocation10 + $0x38] sm:$0xff]
    %v881 = vld [vmem:[#allocation10 + $0x40] sm:$0xff]
    %v882 = vld [vmem:[#allocation10 + $0x48] sm:$0xff]
    %v883 = vld [vmem:[#allocation10 + $0x50] sm:$0xff]
    %v884 = vld [vmem:[#allocation10 + $0x58] sm:$0xff]
    %v885 = vld [vmem:[#allocation10 + $0x60] sm:$0xff]
    %v886 = vld [vmem:[#allocation10 + $0x68] sm:$0xff]
    %v887 = vld [vmem:[#allocation10 + $0x70] sm:$0xff]
    %v888 = vld [vmem:[#allocation10 + $0x78] sm:$0xff]
    %v889 = vld [vmem:[#allocation10 + $0x80] sm:$0xff]
    %v890 = vld [vmem:[#allocation10 + $0x88] sm:$0xff]
    %v891 = vld [vmem:[#allocation10 + $0x90] sm:$0xff]
    %v892 = vld [vmem:[#allocation10 + $0x98] sm:$0xff]
    %v893 = vld [vmem:[#allocation10 + $0xa0] sm:$0xff]
    %v894 = vld [vmem:[#allocation10 + $0xa8] sm:$0xff]
    %v895 = vld [vmem:[#allocation10 + $0xb0] sm:$0xff]
    %v896 = vld [vmem:[#allocation10 + $0xb8] sm:$0xff]
    %v897 = vld [vmem:[#allocation10 + $0xc0] sm:$0xff]
    %v898 = vld [vmem:[#allocation10 + $0xc8] sm:$0xff]
    %v899 = vld [vmem:[#allocation10 + $0xd0] sm:$0xff]
    %v900 = vld [vmem:[#allocation10 + $0xd8] sm:$0xff]
    %v901 = vld [vmem:[#allocation10 + $0xe0] sm:$0xff]
    %v902 = vld [vmem:[#allocation10 + $0xe8] sm:$0xff]
    %v903 = vld [vmem:[#allocation10 + $0xf0] sm:$0xff]
    %v904 = vld [vmem:[#allocation10 + $0xf8] sm:$0xff]
    %v905 = vld [vmem:[#allocation10 + $0x100] sm:$0xff]
    %v906 = vld [vmem:[#allocation10 + $0x108] sm:$0xff]
    %v907 = vld [vmem:[#allocation10 + $0x110] sm:$0xff]
    %v908 = vld [vmem:[#allocation10 + $0x118] sm:$0xff]
    %v909 = vld [vmem:[#allocation10 + $0x120] sm:$0xff]
    %v910 = vld [vmem:[#allocation10 + $0x128] sm:$0xff]
    %v911 = vld [vmem:[#allocation10 + $0x130] sm:$0xff]
    %v912 = vld [vmem:[#allocation10 + $0x138] sm:$0xff]
    %v913 = vld [vmem:[#allocation10 + $0x140] sm:$0xff]
    %v914 = vld [vmem:[#allocation10 + $0x148] sm:$0xff]
    %v915 = vld [vmem:[#allocation10 + $0x150] sm:$0xff]
    %v916 = vld [vmem:[#allocation10 + $0x158] sm:$0xff]
    %v917 = vld [vmem:[#allocation10 + $0x160] sm:$0xff]
    %v918 = vld [vmem:[#allocation10 + $0x168] sm:$0xff]
    %v919 = vld [vmem:[#allocation10 + $0x170] sm:$0xff]
    %v920 = vld [vmem:[#allocation10 + $0x178] sm:$0xff]
    %v921 = vld [vmem:[#allocation10 + $0x180] sm:$0xff]
    %v922 = vld [vmem:[#allocation10 + $0x188] sm:$0xff]
    %v923 = vld [vmem:[#allocation10 + $0x190] sm:$0xff]
    %v924 = vld [vmem:[#allocation10 + $0x198] sm:$0xff]
    %v925 = vld [vmem:[#allocation10 + $0x1a0] sm:$0xff]
    %v926 = vld [vmem:[#allocation10 + $0x1a8] sm:$0xff]
    %v927 = vld [vmem:[#allocation10 + $0x1b0] sm:$0xff]
    %v928 = vld [vmem:[#allocation10 + $0x1b8] sm:$0xff]
    %v929 = vld [vmem:[#allocation10 + $0x1c0] sm:$0xff]
    %v930 = vld [vmem:[#allocation10 + $0x1c8] sm:$0xff]
    %v931 = vld [vmem:[#allocation10 + $0x1d0] sm:$0xff]
    %v932 = vld [vmem:[#allocation10 + $0x1d8] sm:$0xff]
    %v933 = vld [vmem:[#allocation10 + $0x1e0] sm:$0xff]
    %v934 = vld [vmem:[#allocation10 + $0x1e8] sm:$0xff]
    %v935 = vld [vmem:[#allocation10 + $0x1f0] sm:$0xff]
    %v936 = vld [vmem:[#allocation10 + $0x1f8] sm:$0xff]
    %v937 = vld [vmem:[#allocation11 + $0x3] sm:$0x1]
    %v938 = vperm.slane %v937, 0
    %939 = vmatpush.msra.mxu0 %v888
    %940 = vmatpush.msra.mxu0 %v887
    %941 = vmatpush.msra.mxu0 %v886
    %942 = vmatpush.msra.mxu0 %v885
    %943 = vmatpush.msra.mxu0 %v884
    %944 = vmatpush.msra.mxu0 %v883
    %945 = vmatpush.msra.mxu0 %v882
    %946 = vmatpush.msra.mxu0 %v881
    %947 = vmatpush.msra.mxu0 %v880
    %948 = vmatpush.msra.mxu0 %v879
    %949 = vmatpush.msra.mxu0 %v878
    %950 = vmatpush.msra.mxu0 %v877
    %951 = vmatpush.msra.mxu0 %v876
    %952 = vmatpush.msra.mxu0 %v875
    %953 = vmatpush.msra.mxu0 %v874
    %954 = vmatpush.msra.mxu0 %v873
    %955 = vmatmul.f32.gmra.mxu0 %v869
    %v956 = vpop.f32.mrf.mxu0
    %v957 = vadd.f32 %v938, %v956
    %958 = vdwg.mxu0
    %959 = vmatpush.msra.mxu0 %v904
    %960 = vmatpush.msra.mxu0 %v903
    %961 = vmatpush.msra.mxu0 %v902
    %962 = vmatpush.msra.mxu0 %v901
    %963 = vmatpush.msra.mxu0 %v900
    %964 = vmatpush.msra.mxu0 %v899
    %965 = vmatpush.msra.mxu0 %v898
    %966 = vmatpush.msra.mxu0 %v897
    %967 = vmatpush.msra.mxu0 %v896
    %968 = vmatpush.msra.mxu0 %v895
    %969 = vmatpush.msra.mxu0 %v894
    %970 = vmatpush.msra.mxu0 %v893
    %971 = vmatpush.msra.mxu0 %v892
    %972 = vmatpush.msra.mxu0 %v891
    %973 = vmatpush.msra.mxu0 %v890
    %974 = vmatpush.msra.mxu0 %v889
    %975 = vmatmul.f32.gmra.mxu0 %v870
    %v976 = vpop.f32.mrf.mxu0
    %v977 = vadd.f32 %v957, %v976
    %978 = vdwg.mxu0
    %979 = vmatpush.msra.mxu0 %v920
    %980 = vmatpush.msra.mxu0 %v919
    %981 = vmatpush.msra.mxu0 %v918
    %982 = vmatpush.msra.mxu0 %v917
    %983 = vmatpush.msra.mxu0 %v916
    %984 = vmatpush.msra.mxu0 %v915
    %985 = vmatpush.msra.mxu0 %v914
    %986 = vmatpush.msra.mxu0 %v913
    %987 = vmatpush.msra.mxu0 %v912
    %988 = vmatpush.msra.mxu0 %v911
    %989 = vmatpush.msra.mxu0 %v910
    %990 = vmatpush.msra.mxu0 %v909
    %991 = vmatpush.msra.mxu0 %v908
    %992 = vmatpush.msra.mxu0 %v907
    %993 = vmatpush.msra.mxu0 %v906
    %994 = vmatpush.msra.mxu0 %v905
    %995 = vmatmul.f32.gmra.mxu0 %v871
    %v996 = vpop.f32.mrf.mxu0
    %v997 = vadd.f32 %v977, %v996
    %998 = vdwg.mxu0
    %999 = vmatpush.msra.mxu0 %v936
    %1000 = vmatpush.msra.mxu0 %v935
    %1001 = vmatpush.msra.mxu0 %v934
    %1002 = vmatpush.msra.mxu0 %v933
    %1003 = vmatpush.msra.mxu0 %v932
    %1004 = vmatpush.msra.mxu0 %v931
    %1005 = vmatpush.msra.mxu0 %v930
    %1006 = vmatpush.msra.mxu0 %v929
    %1007 = vmatpush.msra.mxu0 %v928
    %1008 = vmatpush.msra.mxu0 %v927
    %1009 = vmatpush.msra.mxu0 %v926
    %1010 = vmatpush.msra.mxu0 %v925
    %1011 = vmatpush.msra.mxu0 %v924
    %1012 = vmatpush.msra.mxu0 %v923
    %1013 = vmatpush.msra.mxu0 %v922
    %1014 = vmatpush.msra.mxu0 %v921
    %1015 = vmatmul.f32.gmra.mxu0 %v872
    %v1016 = vpop.f32.mrf.mxu0
    %v1017 = vadd.f32 %v997, %v1016
    %1018 = vdwg.mxu0
    %1019 = vst [vmem:[#allocation13] sm:$0x3] %v1017
    // Predicated region
    $region50: #{tpu_custom_call.1} parent=1 // pred_check
      _
    $region51: #{tpu_custom_call.1} parent=1 // pred_check_branch
      %1021 = sbr.rel (0) target = $region53
    $region52: #{tpu_custom_call.1} parent=1 // pred_region
      %1023 = vsyncadd [#allocation4], 0
      %s1025 = sshll.u32 [#allocation13], 4
      %s1026 = int_to_ptr.vmem [resolvable:$true] %s1025
      %s1027 = sshll.u32 %s6, 4
      %s1028 = int_to_ptr.hbm [resolvable:$true] %s1027
      %1030 = dma.vmem_to_hbm [thread:$0]  %s1026, 32, %s1028, [#allocation4]
    $region53: #{tpu_custom_call.1} parent=1 // pred_fallthru
      _
    // Predicated region
    $region54: #{tpu_custom_call.1} parent=1 // pred_check
      _
    $region55: #{tpu_custom_call.1} parent=1 // pred_check_branch
      %1032 = sbr.rel (0) target = $region57
    $region56: #{tpu_custom_call.1} parent=1 // pred_region
      %1034 = dma.done [#allocation4], 32
    $region57: #{tpu_custom_call.1} parent=1 // pred_fallthru
      _
    %1035 = vsyncpa [#allocation3], 1
    %1036 = vsyncpa [#allocation6], 1
    %1037 = vsyncpa [#allocation9], 1
    %1038 = vsyncpa [#allocation12], 1
    %1039 = vsyncpa [#allocation4], 1

// kernel: tpu_custom_call.1
$region0: #{tpu_custom_call.1}
  #allocation0 [shape = 'u32[]', space=smem, size = 0x4, offset = 0x4, fixed_abs, tag = 'smem constant byte address 0x4 - core index']
  #allocation1 [shape = 'u32[72,128]{1,0:T(1,128)}', space=vmem, size = 0x9000, scoped, tag = 'internal scratch']
  %s0 = inlined_call_operand.hbm [shape: f32[2,128], index: 0, kind: input, shape index: {}]
  %s1 = inlined_call_operand.hbm [shape: f32[128,512], index: 1, kind: input, shape index: {}]
  %s2 = inlined_call_operand.hbm [shape: f32[512,256], index: 2, kind: input, shape index: {}]
  %s3 = inlined_call_operand.hbm [shape: f32[256,512], index: 3, kind: input, shape index: {}]
  %s4 = inlined_call_operand.hbm [shape: f32[512,128], index: 4, kind: input, shape index: {}]
  %s5 = inlined_call_operand.hbm [shape: f32[4,512], index: 5, kind: input, shape index: {}]
  %s6 = inlined_call_operand.hbm [shape: f32[2,128], index: 6, kind: output, shape index: {}]
  %s7 = sld [smem:[#allocation0]]
  $region58: #{tpu_custom_call.1} parent=0
    _
  %s9 = ssub.s32 1, %s7
  %s10 = scalar_select 0, %s9, %s7
  $region1: #{tpu_custom_call.1} parent=0
    #allocation2 [shape = 'u8[1024]{0}', space=vmem, size = 0x400, scoped, tag = 'input window, operand 0, single buffered']
    #allocation3 [shape = 's32[1]{0}', space=sflag, size = 0x4, scoped, tag = 'scoped memory for tpu_custom_call.1']
    #allocation4 [shape = 's32[1]{0}', space=sflag, size = 0x4, scoped, tag = 'scoped memory for tpu_custom_call.1']
    #allocation5 [shape = 'u8[262144]{0}', space=vmem, size = 0x40000, scoped, tag = 'input window, operand 1, single buffered']
    #allocation6 [shape = 's32[1]{0}', space=sflag, size = 0x4, scoped, tag = 'scoped memory for tpu_custom_call.1']
    #allocation7 [shape = 'u8[524288]{0}', space=vmem, size = 0x80000, scoped, tag = 'input window, operand 2, single buffered']
    #allocation8 [shape = 'u8[524288]{0}', space=vmem, size = 0x80000, scoped, tag = 'input window, operand 3, single buffered']
    #allocation9 [shape = 's32[1]{0}', space=sflag, size = 0x4, scoped, tag = 'scoped memory for tpu_custom_call.1']
    #allocation10 [shape = 'u8[262144]{0}', space=vmem, size = 0x40000, scoped, tag = 'input window, operand 4, single buffered']
    #allocation11 [shape = 'u8[8192]{0}', space=vmem, size = 0x2000, scoped, tag = 'input window, operand 5, single buffered']
    #allocation12 [shape = 's32[1]{0}', space=sflag, size = 0x4, scoped, tag = 'scoped memory for tpu_custom_call.1']
    #allocation13 [shape = 'u8[1024]{0}', space=vmem, size = 0x400, scoped, tag = 'output window, operand 0, single buffered']
    %11 = vsyncpa [#allocation3], 0
    %12 = vsyncpa [#allocation6], 0
    %13 = vsyncpa [#allocation9], 0
    %14 = vsyncpa [#allocation12], 0
    %15 = vsyncpa [#allocation4], 0
    // Predicated region
    $region2: #{tpu_custom_call.1} parent=1 // pred_check
      _
    $region3: #{tpu_custom_call.1} parent=1 // pred_check_branch
      %17 = sbr.rel (0) target = $region5
    $region4: #{tpu_custom_call.1} parent=1 // pred_region
      %19 = vsyncadd [#allocation3], 0
      %s21 = sshll.u32 %s0, 4
      %s22 = int_to_ptr.hbm [resolvable:$true] %s21
      %s23 = sshll.u32 [#allocation2], 4
      %s24 = int_to_ptr.vmem [resolvable:$true] %s23
      %26 = dma.hbm_to_vmem [thread:$0]  %s22, 32, %s24, [#allocation3]
    $region5: #{tpu_custom_call.1} parent=1 // pred_fallthru
      _
    // Predicated region
    $region6: #{tpu_custom_call.1} parent=1 // pred_check
      _
    $region7: #{tpu_custom_call.1} parent=1 // pred_check_branch
      %28 = sbr.rel (0) target = $region9
    $region8: #{tpu_custom_call.1} parent=1 // pred_region
      %30 = vsyncadd [#allocation6], 0
      %s31 = sshll.u32 %s1, 4
      %s32 = int_to_ptr.hbm [resolvable:$true] %s31
      %s33 = sshll.u32 [#allocation5], 4
      %s34 = int_to_ptr.vmem [resolvable:$true] %s33
      %39 = dma.hbm_to_vmem [thread:$0]  %s32, 8192, %s34, [#allocation6], 512, 512, 32
    $region9: #{tpu_custom_call.1} parent=1 // pred_fallthru
      _
    // Predicated region
    $region10: #{tpu_custom_call.1} parent=1 // pred_check
      _
    $region11: #{tpu_custom_call.1} parent=1 // pred_check_branch
      %41 = sbr.rel (0) target = $region13
    $region12: #{tpu_custom_call.1} parent=1 // pred_region
      %43 = vsyncadd [#allocation6], 0
      %s44 = sshll.u32 %s2, 4
      %s45 = int_to_ptr.hbm [resolvable:$true] %s44
      %s46 = sshll.u32 [#allocation7], 4
      %s47 = int_to_ptr.vmem [resolvable:$true] %s46
      %52 = dma.hbm_to_vmem [thread:$0]  %s45, 16384, %s47, [#allocation6], 256, 256, 16
    $region13: #{tpu_custom_call.1} parent=1 // pred_fallthru
      _
    // Predicated region
    $region14: #{tpu_custom_call.1} parent=1 // pred_check
      _
    $region15: #{tpu_custom_call.1} parent=1 // pred_check_branch
      %54 = sbr.rel (0) target = $region17
    $region16: #{tpu_custom_call.1} parent=1 // pred_region
      %56 = vsyncadd [#allocation9], 0
      %s57 = sshll.u32 %s3, 4
      %s58 = int_to_ptr.hbm [resolvable:$true] %s57
      %s59 = sshll.u32 [#allocation8], 4
      %s60 = int_to_ptr.vmem [resolvable:$true] %s59
      %65 = dma.hbm_to_vmem [thread:$0]  %s58, 16384, %s60, [#allocation9], 512, 512, 32
    $region17: #{tpu_custom_call.1} parent=1 // pred_fallthru
      _
    // Predicated region
    $region18: #{tpu_custom_call.1} parent=1 // pred_check
      _
    $region19: #{tpu_custom_call.1} parent=1 // pred_check_branch
      %67 = sbr.rel (0) target = $region21
    $region20: #{tpu_custom_call.1} parent=1 // pred_region
      %69 = vsyncadd [#allocation9], 0
      %s70 = sshll.u32 %s4, 4
      %s71 = int_to_ptr.hbm [resolvable:$true] %s70
      %s72 = sshll.u32 [#allocation10], 4
      %s73 = int_to_ptr.vmem [resolvable:$true] %s72
      %78 = dma.hbm_to_vmem [thread:$0]  %s71, 8192, %s73, [#allocation9], 128, 128, 8
    $region21: #{tpu_custom_call.1} parent=1 // pred_fallthru
      _
    // Predicated region
    $region22: #{tpu_custom_call.1} parent=1 // pred_check
      _
    $region23: #{tpu_custom_call.1} parent=1 // pred_check_branch
      %80 = sbr.rel (0) target = $region25
    $region24: #{tpu_custom_call.1} parent=1 // pred_region
      %82 = vsyncadd [#allocation12], 0
      %s84 = sshll.u32 %s5, 4
      %s85 = int_to_ptr.hbm [resolvable:$true] %s84
      %s86 = sshll.u32 [#allocation11], 4
      %s87 = int_to_ptr.vmem [resolvable:$true] %s86
      %89 = dma.hbm_to_vmem [thread:$0]  %s85, 256, %s87, [#allocation12]
    $region25: #{tpu_custom_call.1} parent=1 // pred_fallthru
      _
    // Predicated region
    $region26: #{tpu_custom_call.1} parent=1 // pred_check
      _
    $region27: #{tpu_custom_call.1} parent=1 // pred_check_branch
      %91 = sbr.rel (0) target = $region29
    $region28: #{tpu_custom_call.1} parent=1 // pred_region
      %93 = dma.done [#allocation3], 32
    $region29: #{tpu_custom_call.1} parent=1 // pred_fallthru
      _
    // Predicated region
    $region30: #{tpu_custom_call.1} parent=1 // pred_check
      _
    $region31: #{tpu_custom_call.1} parent=1 // pred_check_branch
      %95 = sbr.rel (0) target = $region33
    $region32: #{tpu_custom_call.1} parent=1 // pred_region
      %97 = dma.done [#allocation6], 8192
    $region33: #{tpu_custom_call.1} parent=1 // pred_fallthru
      _
    // Predicated region
    $region34: #{tpu_custom_call.1} parent=1 // pred_check
      _
    $region35: #{tpu_custom_call.1} parent=1 // pred_check_branch
      %99 = sbr.rel (0) target = $region37
    $region36: #{tpu_custom_call.1} parent=1 // pred_region
      %101 = dma.done [#allocation6], 16384
    $region37: #{tpu_custom_call.1} parent=1 // pred_fallthru
      _
    // Predicated region
    $region38: #{tpu_custom_call.1} parent=1 // pred_check
      _
    $region39: #{tpu_custom_call.1} parent=1 // pred_check_branch
      %103 = sbr.rel (0) target = $region41
    $region40: #{tpu_custom_call.1} parent=1 // pred_region
      %105 = dma.done [#allocation9], 16384
    $region41: #{tpu_custom_call.1} parent=1 // pred_fallthru
      _
    // Predicated region
    $region42: #{tpu_custom_call.1} parent=1 // pred_check
      _
    $region43: #{tpu_custom_call.1} parent=1 // pred_check_branch
      %107 = sbr.rel (0) target = $region45
    $region44: #{tpu_custom_call.1} parent=1 // pred_region
      %109 = dma.done [#allocation9], 8192
    $region45: #{tpu_custom_call.1} parent=1 // pred_fallthru
      _
    // Predicated region
    $region46: #{tpu_custom_call.1} parent=1 // pred_check
      _
    $region47: #{tpu_custom_call.1} parent=1 // pred_check_branch
      %111 = sbr.rel (0) target = $region49
    $region48: #{tpu_custom_call.1} parent=1 // pred_region
      %113 = dma.done [#allocation12], 256
    $region49: #{tpu_custom_call.1} parent=1 // pred_fallthru
      _
    %v114 = vld [vmem:[#allocation2] sm:$0x3]
    %v115 = vld [vmem:[#allocation5] sm:$0xff]
    %v116 = vld [vmem:[#allocation5 + $0x8] sm:$0xff]
    %v117 = vld [vmem:[#allocation5 + $0x10] sm:$0xff]
    %v118 = vld [vmem:[#allocation5 + $0x18] sm:$0xff]
    %v119 = vld [vmem:[#allocation5 + $0x20] sm:$0xff]
    %v120 = vld [vmem:[#allocation5 + $0x28] sm:$0xff]
    %v121 = vld [vmem:[#allocation5 + $0x30] sm:$0xff]
    %v122 = vld [vmem:[#allocation5 + $0x38] sm:$0xff]
    %v123 = vld [vmem:[#allocation5 + $0x40] sm:$0xff]
    %v124 = vld [vmem:[#allocation5 + $0x48] sm:$0xff]
    %v125 = vld [vmem:[#allocation5 + $0x50] sm:$0xff]
    %v126 = vld [vmem:[#allocation5 + $0x58] sm:$0xff]
    %v127 = vld [vmem:[#allocation5 + $0x60] sm:$0xff]
    %v128 = vld [vmem:[#allocation5 + $0x68] sm:$0xff]
    %v129 = vld [vmem:[#allocation5 + $0x70] sm:$0xff]
    %v130 = vld [vmem:[#allocation5 + $0x78] sm:$0xff]
    %v131 = vld [vmem:[#allocation5 + $0x80] sm:$0xff]
    %v132 = vld [vmem:[#allocation5 + $0x88] sm:$0xff]
    %v133 = vld [vmem:[#allocation5 + $0x90] sm:$0xff]
    %v134 = vld [vmem:[#allocation5 + $0x98] sm:$0xff]
    %v135 = vld [vmem:[#allocation5 + $0xa0] sm:$0xff]
    %v136 = vld [vmem:[#allocation5 + $0xa8] sm:$0xff]
    %v137 = vld [vmem:[#allocation5 + $0xb0] sm:$0xff]
    %v138 = vld [vmem:[#allocation5 + $0xb8] sm:$0xff]
    %v139 = vld [vmem:[#allocation5 + $0xc0] sm:$0xff]
    %v140 = vld [vmem:[#allocation5 + $0xc8] sm:$0xff]
    %v141 = vld [vmem:[#allocation5 + $0xd0] sm:$0xff]
    %v142 = vld [vmem:[#allocation5 + $0xd8] sm:$0xff]
    %v143 = vld [vmem:[#allocation5 + $0xe0] sm:$0xff]
    %v144 = vld [vmem:[#allocation5 + $0xe8] sm:$0xff]
    %v145 = vld [vmem:[#allocation5 + $0xf0] sm:$0xff]
    %v146 = vld [vmem:[#allocation5 + $0xf8] sm:$0xff]
    %v147 = vld [vmem:[#allocation5 + $0x100] sm:$0xff]
    %v148 = vld [vmem:[#allocation5 + $0x108] sm:$0xff]
    %v149 = vld [vmem:[#allocation5 + $0x110] sm:$0xff]
    %v150 = vld [vmem:[#allocation5 + $0x118] sm:$0xff]
    %v151 = vld [vmem:[#allocation5 + $0x120] sm:$0xff]
    %v152 = vld [vmem:[#allocation5 + $0x128] sm:$0xff]
    %v153 = vld [vmem:[#allocation5 + $0x130] sm:$0xff]
    %v154 = vld [vmem:[#allocation5 + $0x138] sm:$0xff]
    %v155 = vld [vmem:[#allocation5 + $0x140] sm:$0xff]
    %v156 = vld [vmem:[#allocation5 + $0x148] sm:$0xff]
    %v157 = vld [vmem:[#allocation5 + $0x150] sm:$0xff]
    %v158 = vld [vmem:[#allocation5 + $0x158] sm:$0xff]
    %v159 = vld [vmem:[#allocation5 + $0x160] sm:$0xff]
    %v160 = vld [vmem:[#allocation5 + $0x168] sm:$0xff]
    %v161 = vld [vmem:[#allocation5 + $0x170] sm:$0xff]
    %v162 = vld [vmem:[#allocation5 + $0x178] sm:$0xff]
    %v163 = vld [vmem:[#allocation5 + $0x180] sm:$0xff]
    %v164 = vld [vmem:[#allocation5 + $0x188] sm:$0xff]
    %v165 = vld [vmem:[#allocation5 + $0x190] sm:$0xff]
    %v166 = vld [vmem:[#allocation5 + $0x198] sm:$0xff]
    %v167 = vld [vmem:[#allocation5 + $0x1a0] sm:$0xff]
    %v168 = vld [vmem:[#allocation5 + $0x1a8] sm:$0xff]
    %v169 = vld [vmem:[#allocation5 + $0x1b0] sm:$0xff]
    %v170 = vld [vmem:[#allocation5 + $0x1b8] sm:$0xff]
    %v171 = vld [vmem:[#allocation5 + $0x1c0] sm:$0xff]
    %v172 = vld [vmem:[#allocation5 + $0x1c8] sm:$0xff]
    %v173 = vld [vmem:[#allocation5 + $0x1d0] sm:$0xff]
    %v174 = vld [vmem:[#allocation5 + $0x1d8] sm:$0xff]
    %v175 = vld [vmem:[#allocation5 + $0x1e0] sm:$0xff]
    %v176 = vld [vmem:[#allocation5 + $0x1e8] sm:$0xff]
    %v177 = vld [vmem:[#allocation5 + $0x1f0] sm:$0xff]
    %v178 = vld [vmem:[#allocation5 + $0x1f8] sm:$0xff]
    %v179 = vld [vmem:[#allocation11] ss:$4 sm:$0xf]
    %v181 = vperm.slane %v179, 0
    %v182 = vperm.slane %v179, 1
    %v183 = vperm.slane %v179, 2
    %v184 = vperm.slane %v179, 3
    %189 = vmatpush.msra.mxu0 %v175
    %190 = vmatpush.msra.mxu0 %v171
    %191 = vmatpush.msra.mxu0 %v167
    %192 = vmatpush.msra.mxu0 %v163
    %193 = vmatpush.msra.mxu0 %v159
    %194 = vmatpush.msra.mxu0 %v155
    %195 = vmatpush.msra.mxu0 %v151
    %196 = vmatpush.msra.mxu0 %v147
    %197 = vmatpush.msra.mxu0 %v143
    %198 = vmatpush.msra.mxu0 %v139
    %199 = vmatpush.msra.mxu0 %v135
    %200 = vmatpush.msra.mxu0 %v131
    %201 = vmatpush.msra.mxu0 %v127
    %202 = vmatpush.msra.mxu0 %v123
    %203 = vmatpush.msra.mxu0 %v119
    %204 = vmatpush.msra.mxu0 %v115
    %205 = vmatmul.f32.gmra.mxu0 %v114
    %v206 = vpop.f32.mrf.mxu0
    %v207 = vadd.f32 %v181, %v206
    %208 = vdwg.mxu0
    %209 = vmatpush.msra.mxu0 %v176
    %210 = vmatpush.msra.mxu0 %v172
    %211 = vmatpush.msra.mxu0 %v168
    %212 = vmatpush.msra.mxu0 %v164
    %213 = vmatpush.msra.mxu0 %v160
    %214 = vmatpush.msra.mxu0 %v156
    %215 = vmatpush.msra.mxu0 %v152
    %216 = vmatpush.msra.mxu0 %v148
    %217 = vmatpush.msra.mxu0 %v144
    %218 = vmatpush.msra.mxu0 %v140
    %219 = vmatpush.msra.mxu0 %v136
    %220 = vmatpush.msra.mxu0 %v132
    %221 = vmatpush.msra.mxu0 %v128
    %222 = vmatpush.msra.mxu0 %v124
    %223 = vmatpush.msra.mxu0 %v120
    %224 = vmatpush.msra.mxu0 %v116
    %225 = vmatmul.f32.gmra.mxu0 %v114
    %v226 = vpop.f32.mrf.mxu0
    %v227 = vadd.f32 %v182, %v226
    %228 = vdwg.mxu0
    %229 = vmatpush.msra.mxu0 %v177
    %230 = vmatpush.msra.mxu0 %v173
    %231 = vmatpush.msra.mxu0 %v169
    %232 = vmatpush.msra.mxu0 %v165
    %233 = vmatpush.msra.mxu0 %v161
    %234 = vmatpush.msra.mxu0 %v157
    %235 = vmatpush.msra.mxu0 %v153
    %236 = vmatpush.msra.mxu0 %v149
    %237 = vmatpush.msra.mxu0 %v145
    %238 = vmatpush.msra.mxu0 %v141
    %239 = vmatpush.msra.mxu0 %v137
    %240 = vmatpush.msra.mxu0 %v133
    %241 = vmatpush.msra.mxu0 %v129
    %242 = vmatpush.msra.mxu0 %v125
    %243 = vmatpush.msra.mxu0 %v121
    %244 = vmatpush.msra.mxu0 %v117
    %245 = vmatmul.f32.gmra.mxu0 %v114
    %v246 = vpop.f32.mrf.mxu0
    %v247 = vadd.f32 %v183, %v246
    %248 = vdwg.mxu0
    %249 = vmatpush.msra.mxu0 %v178
    %250 = vmatpush.msra.mxu0 %v174
    %251 = vmatpush.msra.mxu0 %v170
    %252 = vmatpush.msra.mxu0 %v166
    %253 = vmatpush.msra.mxu0 %v162
    %254 = vmatpush.msra.mxu0 %v158
    %255 = vmatpush.msra.mxu0 %v154
    %256 = vmatpush.msra.mxu0 %v150
    %257 = vmatpush.msra.mxu0 %v146
    %258 = vmatpush.msra.mxu0 %v142
    %259 = vmatpush.msra.mxu0 %v138
    %260 = vmatpush.msra.mxu0 %v134
    %261 = vmatpush.msra.mxu0 %v130
    %262 = vmatpush.msra.mxu0 %v126
    %263 = vmatpush.msra.mxu0 %v122
    %264 = vmatpush.msra.mxu0 %v118
    %265 = vmatmul.f32.gmra.mxu0 %v114
    %v266 = vpop.f32.mrf.mxu0
    %v267 = vadd.f32 %v184, %v266
    %268 = vdwg.mxu0
    %v269 = vmax.f32 %v207, 0.0
    %v270 = vmax.f32 %v227, 0.0
    %v271 = vmax.f32 %v247, 0.0
    %v272 = vmax.f32 %v267, 0.0
    %v273 = vld [vmem:[#allocation7] sm:$0xff]
    %v274 = vld [vmem:[#allocation7 + $0x8] sm:$0xff]
    %v275 = vld [vmem:[#allocation7 + $0x10] sm:$0xff]
    %v276 = vld [vmem:[#allocation7 + $0x18] sm:$0xff]
    %v277 = vld [vmem:[#allocation7 + $0x20] sm:$0xff]
    %v278 = vld [vmem:[#allocation7 + $0x28] sm:$0xff]
    %v279 = vld [vmem:[#allocation7 + $0x30] sm:$0xff]
    %v280 = vld [vmem:[#allocation7 + $0x38] sm:$0xff]
    %v281 = vld [vmem:[#allocation7 + $0x40] sm:$0xff]
    %v282 = vld [vmem:[#allocation7 + $0x48] sm:$0xff]
    %v283 = vld [vmem:[#allocation7 + $0x50] sm:$0xff]
    %v284 = vld [vmem:[#allocation7 + $0x58] sm:$0xff]
    %v285 = vld [vmem:[#allocation7 + $0x60] sm:$0xff]
    %v286 = vld [vmem:[#allocation7 + $0x68] sm:$0xff]
    %v287 = vld [vmem:[#allocation7 + $0x70] sm:$0xff]
    %v288 = vld [vmem:[#allocation7 + $0x78] sm:$0xff]
    %v289 = vld [vmem:[#allocation7 + $0x80] sm:$0xff]
    %v290 = vld [vmem:[#allocation7 + $0x88] sm:$0xff]
    %v291 = vld [vmem:[#allocation7 + $0x90] sm:$0xff]
    %v292 = vld [vmem:[#allocation7 + $0x98] sm:$0xff]
    %v293 = vld [vmem:[#allocation7 + $0xa0] sm:$0xff]
    %v294 = vld [vmem:[#allocation7 + $0xa8] sm:$0xff]
    %v295 = vld [vmem:[#allocation7 + $0xb0] sm:$0xff]
    %v296 = vld [vmem:[#allocation7 + $0xb8] sm:$0xff]
    %v297 = vld [vmem:[#allocation7 + $0xc0] sm:$0xff]
    %v298 = vld [vmem:[#allocation7 + $0xc8] sm:$0xff]
    %v299 = vld [vmem:[#allocation7 + $0xd0] sm:$0xff]
    %v300 = vld [vmem:[#allocation7 + $0xd8] sm:$0xff]
    %v301 = vld [vmem:[#allocation7 + $0xe0] sm:$0xff]
    %v302 = vld [vmem:[#allocation7 + $0xe8] sm:$0xff]
    %v303 = vld [vmem:[#allocation7 + $0xf0] sm:$0xff]
    %v304 = vld [vmem:[#allocation7 + $0xf8] sm:$0xff]
    %v305 = vld [vmem:[#allocation7 + $0x100] sm:$0xff]
    %v306 = vld [vmem:[#allocation7 + $0x108] sm:$0xff]
    %v307 = vld [vmem:[#allocation7 + $0x110] sm:$0xff]
    %v308 = vld [vmem:[#allocation7 + $0x118] sm:$0xff]
    %v309 = vld [vmem:[#allocation7 + $0x120] sm:$0xff]
    %v310 = vld [vmem:[#allocation7 + $0x128] sm:$0xff]
    %v311 = vld [vmem:[#allocation7 + $0x130] sm:$0xff]
    %v312 = vld [vmem:[#allocation7 + $0x138] sm:$0xff]
    %v313 = vld [vmem:[#allocation7 + $0x140] sm:$0xff]
    %v314 = vld [vmem:[#allocation7 + $0x148] sm:$0xff]
    %v315 = vld [vmem:[#allocation7 + $0x150] sm:$0xff]
    %v316 = vld [vmem:[#allocation7 + $0x158] sm:$0xff]
    %v317 = vld [vmem:[#allocation7 + $0x160] sm:$0xff]
    %v318 = vld [vmem:[#allocation7 + $0x168] sm:$0xff]
    %v319 = vld [vmem:[#allocation7 + $0x170] sm:$0xff]
    %v320 = vld [vmem:[#allocation7 + $0x178] sm:$0xff]
    %v321 = vld [vmem:[#allocation7 + $0x180] sm:$0xff]
    %v322 = vld [vmem:[#allocation7 + $0x188] sm:$0xff]
    %v323 = vld [vmem:[#allocation7 + $0x190] sm:$0xff]
    %v324 = vld [vmem:[#allocation7 + $0x198] sm:$0xff]
    %v325 = vld [vmem:[#allocation7 + $0x1a0] sm:$0xff]
    %v326 = vld [vmem:[#allocation7 + $0x1a8] sm:$0xff]
    %v327 = vld [vmem:[#allocation7 + $0x1b0] sm:$0xff]
    %v328 = vld [vmem:[#allocation7 + $0x1b8] sm:$0xff]
    %v329 = vld [vmem:[#allocation7 + $0x1c0] sm:$0xff]
    %v330 = vld [vmem:[#allocation7 + $0x1c8] sm:$0xff]
    %v331 = vld [vmem:[#allocation7 + $0x1d0] sm:$0xff]
    %v332 = vld [vmem:[#allocation7 + $0x1d8] sm:$0xff]
    %v333 = vld [vmem:[#allocation7 + $0x1e0] sm:$0xff]
    %v334 = vld [vmem:[#allocation7 + $0x1e8] sm:$0xff]
    %v335 = vld [vmem:[#allocation7 + $0x1f0] sm:$0xff]
    %v336 = vld [vmem:[#allocation7 + $0x1f8] sm:$0xff]
    %v337 = vld [vmem:[#allocation7 + $0x200] sm:$0xff]
    %v338 = vld [vmem:[#allocation7 + $0x208] sm:$0xff]
    %v339 = vld [vmem:[#allocation7 + $0x210] sm:$0xff]
    %v340 = vld [vmem:[#allocation7 + $0x218] sm:$0xff]
    %v341 = vld [vmem:[#allocation7 + $0x220] sm:$0xff]
    %v342 = vld [vmem:[#allocation7 + $0x228] sm:$0xff]
    %v343 = vld [vmem:[#allocation7 + $0x230] sm:$0xff]
    %v344 = vld [vmem:[#allocation7 + $0x238] sm:$0xff]
    %v345 = vld [vmem:[#allocation7 + $0x240] sm:$0xff]
    %v346 = vld [vmem:[#allocation7 + $0x248] sm:$0xff]
    %v347 = vld [vmem:[#allocation7 + $0x250] sm:$0xff]
    %v348 = vld [vmem:[#allocation7 + $0x258] sm:$0xff]
    %v349 = vld [vmem:[#allocation7 + $0x260] sm:$0xff]
    %v350 = vld [vmem:[#allocation7 + $0x268] sm:$0xff]
    %v351 = vld [vmem:[#allocation7 + $0x270] sm:$0xff]
    %v352 = vld [vmem:[#allocation7 + $0x278] sm:$0xff]
    %v353 = vld [vmem:[#allocation7 + $0x280] sm:$0xff]
    %v354 = vld [vmem:[#allocation7 + $0x288] sm:$0xff]
    %v355 = vld [vmem:[#allocation7 + $0x290] sm:$0xff]
    %v356 = vld [vmem:[#allocation7 + $0x298] sm:$0xff]
    %v357 = vld [vmem:[#allocation7 + $0x2a0] sm:$0xff]
    %v358 = vld [vmem:[#allocation7 + $0x2a8] sm:$0xff]
    %v359 = vld [vmem:[#allocation7 + $0x2b0] sm:$0xff]
    %v360 = vld [vmem:[#allocation7 + $0x2b8] sm:$0xff]
    %v361 = vld [vmem:[#allocation7 + $0x2c0] sm:$0xff]
    %v362 = vld [vmem:[#allocation7 + $0x2c8] sm:$0xff]
    %v363 = vld [vmem:[#allocation7 + $0x2d0] sm:$0xff]
    %v364 = vld [vmem:[#allocation7 + $0x2d8] sm:$0xff]
    %v365 = vld [vmem:[#allocation7 + $0x2e0] sm:$0xff]
    %v366 = vld [vmem:[#allocation7 + $0x2e8] sm:$0xff]
    %v367 = vld [vmem:[#allocation7 + $0x2f0] sm:$0xff]
    %v368 = vld [vmem:[#allocation7 + $0x2f8] sm:$0xff]
    %v369 = vld [vmem:[#allocation7 + $0x300] sm:$0xff]
    %v370 = vld [vmem:[#allocation7 + $0x308] sm:$0xff]
    %v371 = vld [vmem:[#allocation7 + $0x310] sm:$0xff]
    %v372 = vld [vmem:[#allocation7 + $0x318] sm:$0xff]
    %v373 = vld [vmem:[#allocation7 + $0x320] sm:$0xff]
    %v374 = vld [vmem:[#allocation7 + $0x328] sm:$0xff]
    %v375 = vld [vmem:[#allocation7 + $0x330] sm:$0xff]
    %v376 = vld [vmem:[#allocation7 + $0x338] sm:$0xff]
    %v377 = vld [vmem:[#allocation7 + $0x340] sm:$0xff]
    %v378 = vld [vmem:[#allocation7 + $0x348] sm:$0xff]
    %v379 = vld [vmem:[#allocation7 + $0x350] sm:$0xff]
    %v380 = vld [vmem:[#allocation7 + $0x358] sm:$0xff]
    %v381 = vld [vmem:[#allocation7 + $0x360] sm:$0xff]
    %v382 = vld [vmem:[#allocation7 + $0x368] sm:$0xff]
    %v383 = vld [vmem:[#allocation7 + $0x370] sm:$0xff]
    %v384 = vld [vmem:[#allocation7 + $0x378] sm:$0xff]
    %v385 = vld [vmem:[#allocation7 + $0x380] sm:$0xff]
    %v386 = vld [vmem:[#allocation7 + $0x388] sm:$0xff]
    %v387 = vld [vmem:[#allocation7 + $0x390] sm:$0xff]
    %v388 = vld [vmem:[#allocation7 + $0x398] sm:$0xff]
    %v389 = vld [vmem:[#allocation7 + $0x3a0] sm:$0xff]
    %v390 = vld [vmem:[#allocation7 + $0x3a8] sm:$0xff]
    %v391 = vld [vmem:[#allocation7 + $0x3b0] sm:$0xff]
    %v392 = vld [vmem:[#allocation7 + $0x3b8] sm:$0xff]
    %v393 = vld [vmem:[#allocation7 + $0x3c0] sm:$0xff]
    %v394 = vld [vmem:[#allocation7 + $0x3c8] sm:$0xff]
    %v395 = vld [vmem:[#allocation7 + $0x3d0] sm:$0xff]
    %v396 = vld [vmem:[#allocation7 + $0x3d8] sm:$0xff]
    %v397 = vld [vmem:[#allocation7 + $0x3e0] sm:$0xff]
    %v398 = vld [vmem:[#allocation7 + $0x3e8] sm:$0xff]
    %v399 = vld [vmem:[#allocation7 + $0x3f0] sm:$0xff]
    %v400 = vld [vmem:[#allocation7 + $0x3f8] sm:$0xff]
    %s401 = scalar_lea.vmem [#allocation11], 1
    %v402 = vld [vmem:[%s401] ss:$4 sm:$0x3]
    %v404 = vperm.slane %v402, 0
    %v405 = vperm.slane %v402, 1
    %408 = vmatpush.msra.mxu0 %v303
    %409 = vmatpush.msra.mxu0 %v301
    %410 = vmatpush.msra.mxu0 %v299
    %411 = vmatpush.msra.mxu0 %v297
    %412 = vmatpush.msra.mxu0 %v295
    %413 = vmatpush.msra.mxu0 %v293
    %414 = vmatpush.msra.mxu0 %v291
    %415 = vmatpush.msra.mxu0 %v289
    %416 = vmatpush.msra.mxu0 %v287
    %417 = vmatpush.msra.mxu0 %v285
    %418 = vmatpush.msra.mxu0 %v283
    %419 = vmatpush.msra.mxu0 %v281
    %420 = vmatpush.msra.mxu0 %v279
    %421 = vmatpush.msra.mxu0 %v277
    %422 = vmatpush.msra.mxu0 %v275
    %423 = vmatpush.msra.mxu0 %v273
    %424 = vmatmul.f32.gmra.mxu0 %v269
    %v425 = vpop.f32.mrf.mxu0
    %v426 = vadd.f32 %v404, %v425
    %427 = vdwg.mxu0
    %428 = vmatpush.msra.mxu0 %v335
    %429 = vmatpush.msra.mxu0 %v333
    %430 = vmatpush.msra.mxu0 %v331
    %431 = vmatpush.msra.mxu0 %v329
    %432 = vmatpush.msra.mxu0 %v327
    %433 = vmatpush.msra.mxu0 %v325
    %434 = vmatpush.msra.mxu0 %v323
    %435 = vmatpush.msra.mxu0 %v321
    %436 = vmatpush.msra.mxu0 %v319
    %437 = vmatpush.msra.mxu0 %v317
    %438 = vmatpush.msra.mxu0 %v315
    %439 = vmatpush.msra.mxu0 %v313
    %440 = vmatpush.msra.mxu0 %v311
    %441 = vmatpush.msra.mxu0 %v309
    %442 = vmatpush.msra.mxu0 %v307
    %443 = vmatpush.msra.mxu0 %v305
    %444 = vmatmul.f32.gmra.mxu0 %v270
    %v445 = vpop.f32.mrf.mxu0
    %v446 = vadd.f32 %v426, %v445
    %447 = vdwg.mxu0
    %448 = vmatpush.msra.mxu0 %v367
    %449 = vmatpush.msra.mxu0 %v365
    %450 = vmatpush.msra.mxu0 %v363
    %451 = vmatpush.msra.mxu0 %v361
    %452 = vmatpush.msra.mxu0 %v359
    %453 = vmatpush.msra.mxu0 %v357
    %454 = vmatpush.msra.mxu0 %v355
    %455 = vmatpush.msra.mxu0 %v353
    %456 = vmatpush.msra.mxu0 %v351
    %457 = vmatpush.msra.mxu0 %v349
    %458 = vmatpush.msra.mxu0 %v347
    %459 = vmatpush.msra.mxu0 %v345
    %460 = vmatpush.msra.mxu0 %v343
    %461 = vmatpush.msra.mxu0 %v341
    %462 = vmatpush.msra.mxu0 %v339
    %463 = vmatpush.msra.mxu0 %v337
    %464 = vmatmul.f32.gmra.mxu0 %v271
    %v465 = vpop.f32.mrf.mxu0
    %v466 = vadd.f32 %v446, %v465
    %467 = vdwg.mxu0
    %468 = vmatpush.msra.mxu0 %v399
    %469 = vmatpush.msra.mxu0 %v397
    %470 = vmatpush.msra.mxu0 %v395
    %471 = vmatpush.msra.mxu0 %v393
    %472 = vmatpush.msra.mxu0 %v391
    %473 = vmatpush.msra.mxu0 %v389
    %474 = vmatpush.msra.mxu0 %v387
    %475 = vmatpush.msra.mxu0 %v385
    %476 = vmatpush.msra.mxu0 %v383
    %477 = vmatpush.msra.mxu0 %v381
    %478 = vmatpush.msra.mxu0 %v379
    %479 = vmatpush.msra.mxu0 %v377
    %480 = vmatpush.msra.mxu0 %v375
    %481 = vmatpush.msra.mxu0 %v373
    %482 = vmatpush.msra.mxu0 %v371
    %483 = vmatpush.msra.mxu0 %v369
    %484 = vmatmul.f32.gmra.mxu0 %v272
    %v485 = vpop.f32.mrf.mxu0
    %v486 = vadd.f32 %v466, %v485
    %487 = vdwg.mxu0
    %488 = vmatpush.msra.mxu0 %v304
    %489 = vmatpush.msra.mxu0 %v302
    %490 = vmatpush.msra.mxu0 %v300
    %491 = vmatpush.msra.mxu0 %v298
    %492 = vmatpush.msra.mxu0 %v296
    %493 = vmatpush.msra.mxu0 %v294
    %494 = vmatpush.msra.mxu0 %v292
    %495 = vmatpush.msra.mxu0 %v290
    %496 = vmatpush.msra.mxu0 %v288
    %497 = vmatpush.msra.mxu0 %v286
    %498 = vmatpush.msra.mxu0 %v284
    %499 = vmatpush.msra.mxu0 %v282
    %500 = vmatpush.msra.mxu0 %v280
    %501 = vmatpush.msra.mxu0 %v278
    %502 = vmatpush.msra.mxu0 %v276
    %503 = vmatpush.msra.mxu0 %v274
    %504 = vmatmul.f32.gmra.mxu0 %v269
    %v505 = vpop.f32.mrf.mxu0
    %v506 = vadd.f32 %v405, %v505
    %507 = vdwg.mxu0
    %508 = vmatpush.msra.mxu0 %v336
    %509 = vmatpush.msra.mxu0 %v334
    %510 = vmatpush.msra.mxu0 %v332
    %511 = vmatpush.msra.mxu0 %v330
    %512 = vmatpush.msra.mxu0 %v328
    %513 = vmatpush.msra.mxu0 %v326
    %514 = vmatpush.msra.mxu0 %v324
    %515 = vmatpush.msra.mxu0 %v322
    %516 = vmatpush.msra.mxu0 %v320
    %517 = vmatpush.msra.mxu0 %v318
    %518 = vmatpush.msra.mxu0 %v316
    %519 = vmatpush.msra.mxu0 %v314
    %520 = vmatpush.msra.mxu0 %v312
    %521 = vmatpush.msra.mxu0 %v310
    %522 = vmatpush.msra.mxu0 %v308
    %523 = vmatpush.msra.mxu0 %v306
    %524 = vmatmul.f32.gmra.mxu0 %v270
    %v525 = vpop.f32.mrf.mxu0
    %v526 = vadd.f32 %v506, %v525
    %527 = vdwg.mxu0
    %528 = vmatpush.msra.mxu0 %v368
    %529 = vmatpush.msra.mxu0 %v366
    %530 = vmatpush.msra.mxu0 %v364
    %531 = vmatpush.msra.mxu0 %v362
    %532 = vmatpush.msra.mxu0 %v360
    %533 = vmatpush.msra.mxu0 %v358
    %534 = vmatpush.msra.mxu0 %v356
    %535 = vmatpush.msra.mxu0 %v354
    %536 = vmatpush.msra.mxu0 %v352
    %537 = vmatpush.msra.mxu0 %v350
    %538 = vmatpush.msra.mxu0 %v348
    %539 = vmatpush.msra.mxu0 %v346
    %540 = vmatpush.msra.mxu0 %v344
    %541 = vmatpush.msra.mxu0 %v342
    %542 = vmatpush.msra.mxu0 %v340
    %543 = vmatpush.msra.mxu0 %v338
    %544 = vmatmul.f32.gmra.mxu0 %v271
    %v545 = vpop.f32.mrf.mxu0
    %v546 = vadd.f32 %v526, %v545
    %547 = vdwg.mxu0
    %548 = vmatpush.msra.mxu0 %v400
    %549 = vmatpush.msra.mxu0 %v398
    %550 = vmatpush.msra.mxu0 %v396
    %551 = vmatpush.msra.mxu0 %v394
    %552 = vmatpush.msra.mxu0 %v392
    %553 = vmatpush.msra.mxu0 %v390
    %554 = vmatpush.msra.mxu0 %v388
    %555 = vmatpush.msra.mxu0 %v386
    %556 = vmatpush.msra.mxu0 %v384
    %557 = vmatpush.msra.mxu0 %v382
    %558 = vmatpush.msra.mxu0 %v380
    %559 = vmatpush.msra.mxu0 %v378
    %560 = vmatpush.msra.mxu0 %v376
    %561 = vmatpush.msra.mxu0 %v374
    %562 = vmatpush.msra.mxu0 %v372
    %563 = vmatpush.msra.mxu0 %v370
    %564 = vmatmul.f32.gmra.mxu0 %v272
    %v565 = vpop.f32.mrf.mxu0
    %v566 = vadd.f32 %v546, %v565
    %567 = vdwg.mxu0
    %v568 = vmax.f32 %v486, 0.0
    %v569 = vmax.f32 %v566, 0.0
    %v570 = vld [vmem:[#allocation8] sm:$0xff]
    %v571 = vld [vmem:[#allocation8 + $0x8] sm:$0xff]
    %v572 = vld [vmem:[#allocation8 + $0x10] sm:$0xff]
    %v573 = vld [vmem:[#allocation8 + $0x18] sm:$0xff]
    %v574 = vld [vmem:[#allocation8 + $0x20] sm:$0xff]
    %v575 = vld [vmem:[#allocation8 + $0x28] sm:$0xff]
    %v576 = vld [vmem:[#allocation8 + $0x30] sm:$0xff]
    %v577 = vld [vmem:[#allocation8 + $0x38] sm:$0xff]
    %v578 = vld [vmem:[#allocation8 + $0x40] sm:$0xff]
    %v579 = vld [vmem:[#allocation8 + $0x48] sm:$0xff]
    %v580 = vld [vmem:[#allocation8 + $0x50] sm:$0xff]
    %v581 = vld [vmem:[#allocation8 + $0x58] sm:$0xff]
    %v582 = vld [vmem:[#allocation8 + $0x60] sm:$0xff]
    %v583 = vld [vmem:[#allocation8 + $0x68] sm:$0xff]
    %v584 = vld [vmem:[#allocation8 + $0x70] sm:$0xff]
    %v585 = vld [vmem:[#allocation8 + $0x78] sm:$0xff]
    %v586 = vld [vmem:[#allocation8 + $0x80] sm:$0xff]
    %v587 = vld [vmem:[#allocation8 + $0x88] sm:$0xff]
    %v588 = vld [vmem:[#allocation8 + $0x90] sm:$0xff]
    %v589 = vld [vmem:[#allocation8 + $0x98] sm:$0xff]
    %v590 = vld [vmem:[#allocation8 + $0xa0] sm:$0xff]
    %v591 = vld [vmem:[#allocation8 + $0xa8] sm:$0xff]
    %v592 = vld [vmem:[#allocation8 + $0xb0] sm:$0xff]
    %v593 = vld [vmem:[#allocation8 + $0xb8] sm:$0xff]
    %v594 = vld [vmem:[#allocation8 + $0xc0] sm:$0xff]
    %v595 = vld [vmem:[#allocation8 + $0xc8] sm:$0xff]
    %v596 = vld [vmem:[#allocation8 + $0xd0] sm:$0xff]
    %v597 = vld [vmem:[#allocation8 + $0xd8] sm:$0xff]
    %v598 = vld [vmem:[#allocation8 + $0xe0] sm:$0xff]
    %v599 = vld [vmem:[#allocation8 + $0xe8] sm:$0xff]
    %v600 = vld [vmem:[#allocation8 + $0xf0] sm:$0xff]
    %v601 = vld [vmem:[#allocation8 + $0xf8] sm:$0xff]
    %v602 = vld [vmem:[#allocation8 + $0x100] sm:$0xff]
    %v603 = vld [vmem:[#allocation8 + $0x108] sm:$0xff]
    %v604 = vld [vmem:[#allocation8 + $0x110] sm:$0xff]
    %v605 = vld [vmem:[#allocation8 + $0x118] sm:$0xff]
    %v606 = vld [vmem:[#allocation8 + $0x120] sm:$0xff]
    %v607 = vld [vmem:[#allocation8 + $0x128] sm:$0xff]
    %v608 = vld [vmem:[#allocation8 + $0x130] sm:$0xff]
    %v609 = vld [vmem:[#allocation8 + $0x138] sm:$0xff]
    %v610 = vld [vmem:[#allocation8 + $0x140] sm:$0xff]
    %v611 = vld [vmem:[#allocation8 + $0x148] sm:$0xff]
    %v612 = vld [vmem:[#allocation8 + $0x150] sm:$0xff]
    %v613 = vld [vmem:[#allocation8 + $0x158] sm:$0xff]
    %v614 = vld [vmem:[#allocation8 + $0x160] sm:$0xff]
    %v615 = vld [vmem:[#allocation8 + $0x168] sm:$0xff]
    %v616 = vld [vmem:[#allocation8 + $0x170] sm:$0xff]
    %v617 = vld [vmem:[#allocation8 + $0x178] sm:$0xff]
    %v618 = vld [vmem:[#allocation8 + $0x180] sm:$0xff]
    %v619 = vld [vmem:[#allocation8 + $0x188] sm:$0xff]
    %v620 = vld [vmem:[#allocation8 + $0x190] sm:$0xff]
    %v621 = vld [vmem:[#allocation8 + $0x198] sm:$0xff]
    %v622 = vld [vmem:[#allocation8 + $0x1a0] sm:$0xff]
    %v623 = vld [vmem:[#allocation8 + $0x1a8] sm:$0xff]
    %v624 = vld [vmem:[#allocation8 + $0x1b0] sm:$0xff]
    %v625 = vld [vmem:[#allocation8 + $0x1b8] sm:$0xff]
    %v626 = vld [vmem:[#allocation8 + $0x1c0] sm:$0xff]
    %v627 = vld [vmem:[#allocation8 + $0x1c8] sm:$0xff]
    %v628 = vld [vmem:[#allocation8 + $0x1d0] sm:$0xff]
    %v629 = vld [vmem:[#allocation8 + $0x1d8] sm:$0xff]
    %v630 = vld [vmem:[#allocation8 + $0x1e0] sm:$0xff]
    %v631 = vld [vmem:[#allocation8 + $0x1e8] sm:$0xff]
    %v632 = vld [vmem:[#allocation8 + $0x1f0] sm:$0xff]
    %v633 = vld [vmem:[#allocation8 + $0x1f8] sm:$0xff]
    %v634 = vld [vmem:[#allocation8 + $0x200] sm:$0xff]
    %v635 = vld [vmem:[#allocation8 + $0x208] sm:$0xff]
    %v636 = vld [vmem:[#allocation8 + $0x210] sm:$0xff]
    %v637 = vld [vmem:[#allocation8 + $0x218] sm:$0xff]
    %v638 = vld [vmem:[#allocation8 + $0x220] sm:$0xff]
    %v639 = vld [vmem:[#allocation8 + $0x228] sm:$0xff]
    %v640 = vld [vmem:[#allocation8 + $0x230] sm:$0xff]
    %v641 = vld [vmem:[#allocation8 + $0x238] sm:$0xff]
    %v642 = vld [vmem:[#allocation8 + $0x240] sm:$0xff]
    %v643 = vld [vmem:[#allocation8 + $0x248] sm:$0xff]
    %v644 = vld [vmem:[#allocation8 + $0x250] sm:$0xff]
    %v645 = vld [vmem:[#allocation8 + $0x258] sm:$0xff]
    %v646 = vld [vmem:[#allocation8 + $0x260] sm:$0xff]
    %v647 = vld [vmem:[#allocation8 + $0x268] sm:$0xff]
    %v648 = vld [vmem:[#allocation8 + $0x270] sm:$0xff]
    %v649 = vld [vmem:[#allocation8 + $0x278] sm:$0xff]
    %v650 = vld [vmem:[#allocation8 + $0x280] sm:$0xff]
    %v651 = vld [vmem:[#allocation8 + $0x288] sm:$0xff]
    %v652 = vld [vmem:[#allocation8 + $0x290] sm:$0xff]
    %v653 = vld [vmem:[#allocation8 + $0x298] sm:$0xff]
    %v654 = vld [vmem:[#allocation8 + $0x2a0] sm:$0xff]
    %v655 = vld [vmem:[#allocation8 + $0x2a8] sm:$0xff]
    %v656 = vld [vmem:[#allocation8 + $0x2b0] sm:$0xff]
    %v657 = vld [vmem:[#allocation8 + $0x2b8] sm:$0xff]
    %v658 = vld [vmem:[#allocation8 + $0x2c0] sm:$0xff]
    %v659 = vld [vmem:[#allocation8 + $0x2c8] sm:$0xff]
    %v660 = vld [vmem:[#allocation8 + $0x2d0] sm:$0xff]
    %v661 = vld [vmem:[#allocation8 + $0x2d8] sm:$0xff]
    %v662 = vld [vmem:[#allocation8 + $0x2e0] sm:$0xff]
    %v663 = vld [vmem:[#allocation8 + $0x2e8] sm:$0xff]
    %v664 = vld [vmem:[#allocation8 + $0x2f0] sm:$0xff]
    %v665 = vld [vmem:[#allocation8 + $0x2f8] sm:$0xff]
    %v666 = vld [vmem:[#allocation8 + $0x300] sm:$0xff]
    %v667 = vld [vmem:[#allocation8 + $0x308] sm:$0xff]
    %v668 = vld [vmem:[#allocation8 + $0x310] sm:$0xff]
    %v669 = vld [vmem:[#allocation8 + $0x318] sm:$0xff]
    %v670 = vld [vmem:[#allocation8 + $0x320] sm:$0xff]
    %v671 = vld [vmem:[#allocation8 + $0x328] sm:$0xff]
    %v672 = vld [vmem:[#allocation8 + $0x330] sm:$0xff]
    %v673 = vld [vmem:[#allocation8 + $0x338] sm:$0xff]
    %v674 = vld [vmem:[#allocation8 + $0x340] sm:$0xff]
    %v675 = vld [vmem:[#allocation8 + $0x348] sm:$0xff]
    %v676 = vld [vmem:[#allocation8 + $0x350] sm:$0xff]
    %v677 = vld [vmem:[#allocation8 + $0x358] sm:$0xff]
    %v678 = vld [vmem:[#allocation8 + $0x360] sm:$0xff]
    %v679 = vld [vmem:[#allocation8 + $0x368] sm:$0xff]
    %v680 = vld [vmem:[#allocation8 + $0x370] sm:$0xff]
    %v681 = vld [vmem:[#allocation8 + $0x378] sm:$0xff]
    %v682 = vld [vmem:[#allocation8 + $0x380] sm:$0xff]
    %v683 = vld [vmem:[#allocation8 + $0x388] sm:$0xff]
    %v684 = vld [vmem:[#allocation8 + $0x390] sm:$0xff]
    %v685 = vld [vmem:[#allocation8 + $0x398] sm:$0xff]
    %v686 = vld [vmem:[#allocation8 + $0x3a0] sm:$0xff]
    %v687 = vld [vmem:[#allocation8 + $0x3a8] sm:$0xff]
    %v688 = vld [vmem:[#allocation8 + $0x3b0] sm:$0xff]
    %v689 = vld [vmem:[#allocation8 + $0x3b8] sm:$0xff]
    %v690 = vld [vmem:[#allocation8 + $0x3c0] sm:$0xff]
    %v691 = vld [vmem:[#allocation8 + $0x3c8] sm:$0xff]
    %v692 = vld [vmem:[#allocation8 + $0x3d0] sm:$0xff]
    %v693 = vld [vmem:[#allocation8 + $0x3d8] sm:$0xff]
    %v694 = vld [vmem:[#allocation8 + $0x3e0] sm:$0xff]
    %v695 = vld [vmem:[#allocation8 + $0x3e8] sm:$0xff]
    %v696 = vld [vmem:[#allocation8 + $0x3f0] sm:$0xff]
    %v697 = vld [vmem:[#allocation8 + $0x3f8] sm:$0xff]
    %s698 = scalar_lea.vmem [#allocation11], 2
    %v699 = vld [vmem:[%s698] ss:$4 sm:$0xf]
    %v701 = vperm.slane %v699, 0
    %v702 = vperm.slane %v699, 1
    %v703 = vperm.slane %v699, 2
    %v704 = vperm.slane %v699, 3
    %709 = vmatpush.msra.mxu0 %v630
    %710 = vmatpush.msra.mxu0 %v626
    %711 = vmatpush.msra.mxu0 %v622
    %712 = vmatpush.msra.mxu0 %v618
    %713 = vmatpush.msra.mxu0 %v614
    %714 = vmatpush.msra.mxu0 %v610
    %715 = vmatpush.msra.mxu0 %v606
    %716 = vmatpush.msra.mxu0 %v602
    %717 = vmatpush.msra.mxu0 %v598
    %718 = vmatpush.msra.mxu0 %v594
    %719 = vmatpush.msra.mxu0 %v590
    %720 = vmatpush.msra.mxu0 %v586
    %721 = vmatpush.msra.mxu0 %v582
    %722 = vmatpush.msra.mxu0 %v578
    %723 = vmatpush.msra.mxu0 %v574
    %724 = vmatpush.msra.mxu0 %v570
    %725 = vmatmul.f32.gmra.mxu0 %v568
    %v726 = vpop.f32.mrf.mxu0
    %v727 = vadd.f32 %v701, %v726
    %728 = vdwg.mxu0
    %729 = vmatpush.msra.mxu0 %v694
    %730 = vmatpush.msra.mxu0 %v690
    %731 = vmatpush.msra.mxu0 %v686
    %732 = vmatpush.msra.mxu0 %v682
    %733 = vmatpush.msra.mxu0 %v678
    %734 = vmatpush.msra.mxu0 %v674
    %735 = vmatpush.msra.mxu0 %v670
    %736 = vmatpush.msra.mxu0 %v666
    %737 = vmatpush.msra.mxu0 %v662
    %738 = vmatpush.msra.mxu0 %v658
    %739 = vmatpush.msra.mxu0 %v654
    %740 = vmatpush.msra.mxu0 %v650
    %741 = vmatpush.msra.mxu0 %v646
    %742 = vmatpush.msra.mxu0 %v642
    %743 = vmatpush.msra.mxu0 %v638
    %744 = vmatpush.msra.mxu0 %v634
    %745 = vmatmul.f32.gmra.mxu0 %v569
    %v746 = vpop.f32.mrf.mxu0
    %v747 = vadd.f32 %v727, %v746
    %748 = vdwg.mxu0
    %749 = vmatpush.msra.mxu0 %v631
    %750 = vmatpush.msra.mxu0 %v627
    %751 = vmatpush.msra.mxu0 %v623
    %752 = vmatpush.msra.mxu0 %v619
    %753 = vmatpush.msra.mxu0 %v615
    %754 = vmatpush.msra.mxu0 %v611
    %755 = vmatpush.msra.mxu0 %v607
    %756 = vmatpush.msra.mxu0 %v603
    %757 = vmatpush.msra.mxu0 %v599
    %758 = vmatpush.msra.mxu0 %v595
    %759 = vmatpush.msra.mxu0 %v591
    %760 = vmatpush.msra.mxu0 %v587
    %761 = vmatpush.msra.mxu0 %v583
    %762 = vmatpush.msra.mxu0 %v579
    %763 = vmatpush.msra.mxu0 %v575
    %764 = vmatpush.msra.mxu0 %v571
    %765 = vmatmul.f32.gmra.mxu0 %v568
    %v766 = vpop.f32.mrf.mxu0
    %v767 = vadd.f32 %v702, %v766
    %768 = vdwg.mxu0
    %769 = vmatpush.msra.mxu0 %v695
    %770 = vmatpush.msra.mxu0 %v691
    %771 = vmatpush.msra.mxu0 %v687
    %772 = vmatpush.msra.mxu0 %v683
    %773 = vmatpush.msra.mxu0 %v679
    %774 = vmatpush.msra.mxu0 %v675
    %775 = vmatpush.msra.mxu0 %v671
    %776 = vmatpush.msra.mxu0 %v667
    %777 = vmatpush.msra.mxu0 %v663
    %778 = vmatpush.msra.mxu0 %v659
    %779 = vmatpush.msra.mxu0 %v655
    %780 = vmatpush.msra.mxu0 %v651
    %781 = vmatpush.msra.mxu0 %v647
    %782 = vmatpush.msra.mxu0 %v643
    %783 = vmatpush.msra.mxu0 %v639
    %784 = vmatpush.msra.mxu0 %v635
    %785 = vmatmul.f32.gmra.mxu0 %v569
    %v786 = vpop.f32.mrf.mxu0
    %v787 = vadd.f32 %v767, %v786
    %788 = vdwg.mxu0
    %789 = vmatpush.msra.mxu0 %v632
    %790 = vmatpush.msra.mxu0 %v628
    %791 = vmatpush.msra.mxu0 %v624
    %792 = vmatpush.msra.mxu0 %v620
    %793 = vmatpush.msra.mxu0 %v616
    %794 = vmatpush.msra.mxu0 %v612
    %795 = vmatpush.msra.mxu0 %v608
    %796 = vmatpush.msra.mxu0 %v604
    %797 = vmatpush.msra.mxu0 %v600
    %798 = vmatpush.msra.mxu0 %v596
    %799 = vmatpush.msra.mxu0 %v592
    %800 = vmatpush.msra.mxu0 %v588
    %801 = vmatpush.msra.mxu0 %v584
    %802 = vmatpush.msra.mxu0 %v580
    %803 = vmatpush.msra.mxu0 %v576
    %804 = vmatpush.msra.mxu0 %v572
    %805 = vmatmul.f32.gmra.mxu0 %v568
    %v806 = vpop.f32.mrf.mxu0
    %v807 = vadd.f32 %v703, %v806
    %808 = vdwg.mxu0
    %809 = vmatpush.msra.mxu0 %v696
    %810 = vmatpush.msra.mxu0 %v692
    %811 = vmatpush.msra.mxu0 %v688
    %812 = vmatpush.msra.mxu0 %v684
    %813 = vmatpush.msra.mxu0 %v680
    %814 = vmatpush.msra.mxu0 %v676
    %815 = vmatpush.msra.mxu0 %v672
    %816 = vmatpush.msra.mxu0 %v668
    %817 = vmatpush.msra.mxu0 %v664
    %818 = vmatpush.msra.mxu0 %v660
    %819 = vmatpush.msra.mxu0 %v656
    %820 = vmatpush.msra.mxu0 %v652
    %821 = vmatpush.msra.mxu0 %v648
    %822 = vmatpush.msra.mxu0 %v644
    %823 = vmatpush.msra.mxu0 %v640
    %824 = vmatpush.msra.mxu0 %v636
    %825 = vmatmul.f32.gmra.mxu0 %v569
    %v826 = vpop.f32.mrf.mxu0
    %v827 = vadd.f32 %v807, %v826
    %828 = vdwg.mxu0
    %829 = vmatpush.msra.mxu0 %v633
    %830 = vmatpush.msra.mxu0 %v629
    %831 = vmatpush.msra.mxu0 %v625
    %832 = vmatpush.msra.mxu0 %v621
    %833 = vmatpush.msra.mxu0 %v617
    %834 = vmatpush.msra.mxu0 %v613
    %835 = vmatpush.msra.mxu0 %v609
    %836 = vmatpush.msra.mxu0 %v605
    %837 = vmatpush.msra.mxu0 %v601
    %838 = vmatpush.msra.mxu0 %v597
    %839 = vmatpush.msra.mxu0 %v593
    %840 = vmatpush.msra.mxu0 %v589
    %841 = vmatpush.msra.mxu0 %v585
    %842 = vmatpush.msra.mxu0 %v581
    %843 = vmatpush.msra.mxu0 %v577
    %844 = vmatpush.msra.mxu0 %v573
    %845 = vmatmul.f32.gmra.mxu0 %v568
    %v846 = vpop.f32.mrf.mxu0
    %v847 = vadd.f32 %v704, %v846
    %848 = vdwg.mxu0
    %849 = vmatpush.msra.mxu0 %v697
    %850 = vmatpush.msra.mxu0 %v693
    %851 = vmatpush.msra.mxu0 %v689
    %852 = vmatpush.msra.mxu0 %v685
    %853 = vmatpush.msra.mxu0 %v681
    %854 = vmatpush.msra.mxu0 %v677
    %855 = vmatpush.msra.mxu0 %v673
    %856 = vmatpush.msra.mxu0 %v669
    %857 = vmatpush.msra.mxu0 %v665
    %858 = vmatpush.msra.mxu0 %v661
    %859 = vmatpush.msra.mxu0 %v657
    %860 = vmatpush.msra.mxu0 %v653
    %861 = vmatpush.msra.mxu0 %v649
    %862 = vmatpush.msra.mxu0 %v645
    %863 = vmatpush.msra.mxu0 %v641
    %864 = vmatpush.msra.mxu0 %v637
    %865 = vmatmul.f32.gmra.mxu0 %v569
    %v866 = vpop.f32.mrf.mxu0
    %v867 = vadd.f32 %v847, %v866
    %868 = vdwg.mxu0
    %v869 = vmax.f32 %v747, 0.0
    %v870 = vmax.f32 %v787, 0.0
    %v871 = vmax.f32 %v827, 0.0
    %v872 = vmax.f32 %v867, 0.0
    %v873 = vld [vmem:[#allocation10] sm:$0xff]
    %v874 = vld [vmem:[#allocation10 + $0x8] sm:$0xff]
    %v875 = vld [vmem:[#allocation10 + $0x10] sm:$0xff]
    %v876 = vld [vmem:[#allocation10 + $0x18] sm:$0xff]
    %v877 = vld [vmem:[#allocation10 + $0x20] sm:$0xff]
    %v878 = vld [vmem:[#allocation10 + $0x28] sm:$0xff]
    %v879 = vld [vmem:[#allocation10 + $0x30] sm:$0xff]
    %v880 = vld [vmem:[#allocation10 + $0x38] sm:$0xff]
    %v881 = vld [vmem:[#allocation10 + $0x40] sm:$0xff]
    %v882 = vld [vmem:[#allocation10 + $0x48] sm:$0xff]
    %v883 = vld [vmem:[#allocation10 + $0x50] sm:$0xff]
    %v884 = vld [vmem:[#allocation10 + $0x58] sm:$0xff]
    %v885 = vld [vmem:[#allocation10 + $0x60] sm:$0xff]
    %v886 = vld [vmem:[#allocation10 + $0x68] sm:$0xff]
    %v887 = vld [vmem:[#allocation10 + $0x70] sm:$0xff]
    %v888 = vld [vmem:[#allocation10 + $0x78] sm:$0xff]
    %v889 = vld [vmem:[#allocation10 + $0x80] sm:$0xff]
    %v890 = vld [vmem:[#allocation10 + $0x88] sm:$0xff]
    %v891 = vld [vmem:[#allocation10 + $0x90] sm:$0xff]
    %v892 = vld [vmem:[#allocation10 + $0x98] sm:$0xff]
    %v893 = vld [vmem:[#allocation10 + $0xa0] sm:$0xff]
    %v894 = vld [vmem:[#allocation10 + $0xa8] sm:$0xff]
    %v895 = vld [vmem:[#allocation10 + $0xb0] sm:$0xff]
    %v896 = vld [vmem:[#allocation10 + $0xb8] sm:$0xff]
    %v897 = vld [vmem:[#allocation10 + $0xc0] sm:$0xff]
    %v898 = vld [vmem:[#allocation10 + $0xc8] sm:$0xff]
    %v899 = vld [vmem:[#allocation10 + $0xd0] sm:$0xff]
    %v900 = vld [vmem:[#allocation10 + $0xd8] sm:$0xff]
    %v901 = vld [vmem:[#allocation10 + $0xe0] sm:$0xff]
    %v902 = vld [vmem:[#allocation10 + $0xe8] sm:$0xff]
    %v903 = vld [vmem:[#allocation10 + $0xf0] sm:$0xff]
    %v904 = vld [vmem:[#allocation10 + $0xf8] sm:$0xff]
    %v905 = vld [vmem:[#allocation10 + $0x100] sm:$0xff]
    %v906 = vld [vmem:[#allocation10 + $0x108] sm:$0xff]
    %v907 = vld [vmem:[#allocation10 + $0x110] sm:$0xff]
    %v908 = vld [vmem:[#allocation10 + $0x118] sm:$0xff]
    %v909 = vld [vmem:[#allocation10 + $0x120] sm:$0xff]
    %v910 = vld [vmem:[#allocation10 + $0x128] sm:$0xff]
    %v911 = vld [vmem:[#allocation10 + $0x130] sm:$0xff]
    %v912 = vld [vmem:[#allocation10 + $0x138] sm:$0xff]
    %v913 = vld [vmem:[#allocation10 + $0x140] sm:$0xff]
    %v914 = vld [vmem:[#allocation10 + $0x148] sm:$0xff]
    %v915 = vld [vmem:[#allocation10 + $0x150] sm:$0xff]
    %v916 = vld [vmem:[#allocation10 + $0x158] sm:$0xff]
    %v917 = vld [vmem:[#allocation10 + $0x160] sm:$0xff]
    %v918 = vld [vmem:[#allocation10 + $0x168] sm:$0xff]
    %v919 = vld [vmem:[#allocation10 + $0x170] sm:$0xff]
    %v920 = vld [vmem:[#allocation10 + $0x178] sm:$0xff]
    %v921 = vld [vmem:[#allocation10 + $0x180] sm:$0xff]
    %v922 = vld [vmem:[#allocation10 + $0x188] sm:$0xff]
    %v923 = vld [vmem:[#allocation10 + $0x190] sm:$0xff]
    %v924 = vld [vmem:[#allocation10 + $0x198] sm:$0xff]
    %v925 = vld [vmem:[#allocation10 + $0x1a0] sm:$0xff]
    %v926 = vld [vmem:[#allocation10 + $0x1a8] sm:$0xff]
    %v927 = vld [vmem:[#allocation10 + $0x1b0] sm:$0xff]
    %v928 = vld [vmem:[#allocation10 + $0x1b8] sm:$0xff]
    %v929 = vld [vmem:[#allocation10 + $0x1c0] sm:$0xff]
    %v930 = vld [vmem:[#allocation10 + $0x1c8] sm:$0xff]
    %v931 = vld [vmem:[#allocation10 + $0x1d0] sm:$0xff]
    %v932 = vld [vmem:[#allocation10 + $0x1d8] sm:$0xff]
    %v933 = vld [vmem:[#allocation10 + $0x1e0] sm:$0xff]
    %v934 = vld [vmem:[#allocation10 + $0x1e8] sm:$0xff]
    %v935 = vld [vmem:[#allocation10 + $0x1f0] sm:$0xff]
    %v936 = vld [vmem:[#allocation10 + $0x1f8] sm:$0xff]
    %v937 = vld [vmem:[#allocation11 + $0x3] sm:$0x1]
    %v938 = vperm.slane %v937, 0
    %939 = vmatpush.msra.mxu0 %v888
    %940 = vmatpush.msra.mxu0 %v887
    %941 = vmatpush.msra.mxu0 %v886
    %942 = vmatpush.msra.mxu0 %v885
    %943 = vmatpush.msra.mxu0 %v884
    %944 = vmatpush.msra.mxu0 %v883
    %945 = vmatpush.msra.mxu0 %v882
    %946 = vmatpush.msra.mxu0 %v881
    %947 = vmatpush.msra.mxu0 %v880
    %948 = vmatpush.msra.mxu0 %v879
    %949 = vmatpush.msra.mxu0 %v878
    %950 = vmatpush.msra.mxu0 %v877
    %951 = vmatpush.msra.mxu0 %v876
    %952 = vmatpush.msra.mxu0 %v875
    %953 = vmatpush.msra.mxu0 %v874
    %954 = vmatpush.msra.mxu0 %v873
    %955 = vmatmul.f32.gmra.mxu0 %v869
    %v956 = vpop.f32.mrf.mxu0
    %v957 = vadd.f32 %v938, %v956
    %958 = vdwg.mxu0
    %959 = vmatpush.msra.mxu0 %v904
    %960 = vmatpush.msra.mxu0 %v903
    %961 = vmatpush.msra.mxu0 %v902
    %962 = vmatpush.msra.mxu0 %v901
    %963 = vmatpush.msra.mxu0 %v900
    %964 = vmatpush.msra.mxu0 %v899
    %965 = vmatpush.msra.mxu0 %v898
    %966 = vmatpush.msra.mxu0 %v897
    %967 = vmatpush.msra.mxu0 %v896
    %968 = vmatpush.msra.mxu0 %v895
    %969 = vmatpush.msra.mxu0 %v894
    %970 = vmatpush.msra.mxu0 %v893
    %971 = vmatpush.msra.mxu0 %v892
    %972 = vmatpush.msra.mxu0 %v891
    %973 = vmatpush.msra.mxu0 %v890
    %974 = vmatpush.msra.mxu0 %v889
    %975 = vmatmul.f32.gmra.mxu0 %v870
    %v976 = vpop.f32.mrf.mxu0
    %v977 = vadd.f32 %v957, %v976
    %978 = vdwg.mxu0
    %979 = vmatpush.msra.mxu0 %v920
    %980 = vmatpush.msra.mxu0 %v919
    %981 = vmatpush.msra.mxu0 %v918
    %982 = vmatpush.msra.mxu0 %v917
    %983 = vmatpush.msra.mxu0 %v916
    %984 = vmatpush.msra.mxu0 %v915
    %985 = vmatpush.msra.mxu0 %v914
    %986 = vmatpush.msra.mxu0 %v913
    %987 = vmatpush.msra.mxu0 %v912
    %988 = vmatpush.msra.mxu0 %v911
    %989 = vmatpush.msra.mxu0 %v910
    %990 = vmatpush.msra.mxu0 %v909
    %991 = vmatpush.msra.mxu0 %v908
    %992 = vmatpush.msra.mxu0 %v907
    %993 = vmatpush.msra.mxu0 %v906
    %994 = vmatpush.msra.mxu0 %v905
    %995 = vmatmul.f32.gmra.mxu0 %v871
    %v996 = vpop.f32.mrf.mxu0
    %v997 = vadd.f32 %v977, %v996
    %998 = vdwg.mxu0
    %999 = vmatpush.msra.mxu0 %v936
    %1000 = vmatpush.msra.mxu0 %v935
    %1001 = vmatpush.msra.mxu0 %v934
    %1002 = vmatpush.msra.mxu0 %v933
    %1003 = vmatpush.msra.mxu0 %v932
    %1004 = vmatpush.msra.mxu0 %v931
    %1005 = vmatpush.msra.mxu0 %v930
    %1006 = vmatpush.msra.mxu0 %v929
    %1007 = vmatpush.msra.mxu0 %v928
    %1008 = vmatpush.msra.mxu0 %v927
    %1009 = vmatpush.msra.mxu0 %v926
    %1010 = vmatpush.msra.mxu0 %v925
    %1011 = vmatpush.msra.mxu0 %v924
    %1012 = vmatpush.msra.mxu0 %v923
    %1013 = vmatpush.msra.mxu0 %v922
    %1014 = vmatpush.msra.mxu0 %v921
    %1015 = vmatmul.f32.gmra.mxu0 %v872
    %v1016 = vpop.f32.mrf.mxu0
    %v1017 = vadd.f32 %v997, %v1016
    %1018 = vdwg.mxu0
    %1019 = vst [vmem:[#allocation13] sm:$0x3] %v1017
    // Predicated region
    $region50: #{tpu_custom_call.1} parent=1 // pred_check
      _
    $region51: #{tpu_custom_call.1} parent=1 // pred_check_branch
      %1021 = sbr.rel (0) target = $region53
    $region52: #{tpu_custom_call.1} parent=1 // pred_region
      %1023 = vsyncadd [#allocation4], 0
      %s1025 = sshll.u32 [#allocation13], 4
      %s1026 = int_to_ptr.vmem [resolvable:$true] %s1025
      %s1027 = sshll.u32 %s6, 4
      %s1028 = int_to_ptr.hbm [resolvable:$true] %s1027
      %1030 = dma.vmem_to_hbm [thread:$0]  %s1026, 32, %s1028, [#allocation4]
    $region53: #{tpu_custom_call.1} parent=1 // pred_fallthru
      _
    // Predicated region
    $region54: #{tpu_custom_call.1} parent=1 // pred_check
      _
    $region55: #{tpu_custom_call.1} parent=1 // pred_check_branch
      %1032 = sbr.rel (0) target = $region57
    $region56: #{tpu_custom_call.1} parent=1 // pred_region
      %1034 = dma.done [#allocation4], 32
    $region57: #{tpu_custom_call.1} parent=1 // pred_fallthru
      _
    %1035 = vsyncpa [#allocation3], 1
    %1036 = vsyncpa [#allocation6], 1
    %1037 = vsyncpa [#allocation9], 1
    %1038 = vsyncpa [#allocation12], 1
    %1039 = vsyncpa [#allocation4], 1

</llo_original>
